<compile_context>
chip_gen: v5e
topology: v5e:2x2
jax: 0.10.0
libtpu: 0.0.40
codegen_flags: <defaults>
</compile_context>

<pallas_src>
import functools

import jax
import jax.numpy as jnp
import numpy as np
from jax import lax
from jax.experimental import pallas as pl
from jax.experimental.pallas import tpu as pltpu


def _pick_batch_block(batch, n):
    """Images per grid step: amortize step overhead for small N, 1 for big N."""
    target = max(1, min(8, 2048 // (n * n)))
    bb = 1
    for d in range(1, min(batch, target) + 1):
        if batch % d == 0:
            bb = d
    return bb


def _pick_i_chunk(n):
    """Largest divisor of N that is <= 8 (rows per contraction chunk)."""
    for d in range(min(8, n), 0, -1):
        if n % d == 0:
            return d
    return 1


def _emd2d_kernel(s_ref, t_ref, lo_ref, up_ref, out_ref, cdfp_ref, *,
                  n, bb, ch, n_chunks, count_ch):
    """One grid step: `bb` images; writes per-image partial sums (1, N) each.

    s_ref/t_ref : (bb, C, N, N) channel-major histogram planes (native dtype)
    lo_ref/up_ref: (N, N) f32 triangular cumsum operators (grid-resident)
    out_ref     : (bb, 1, N) f32 partial sums (sum over i, j; k kept on lanes)
    cdfp_ref    : (N, N) f32 scratch so i-chunks can slice cdf_p rows via pl.ds
    """
    f32 = jnp.float32
    hp = lax.Precision.HIGHEST
    lo = lo_ref[...]
    up = up_ref[...]

    for bi in range(bb):                                   # static, bb <= 8
        pc = s_ref[bi, count_ch].astype(f32)               # (N, N) pred counts
        tc = t_ref[bi, count_ch].astype(f32)               # (N, N) tgt counts
        tx = t_ref[bi, 0].astype(f32)                      # (N, N) tgt bin x
        ty = t_ref[bi, 1].astype(f32)                      # (N, N) tgt bin y

        # Per-image normalization (same `x / (sum + 1e-6)` as PyTorch).
        pcn = pc / (jnp.sum(pc) + 1e-6)
        tcn = tc / (jnp.sum(tc) + 1e-6)

        # 2-D CDF = lo @ (X @ up); HIGHEST precision keeps f32 exact on the MXU.
        cdf_p = jnp.dot(lo,
                        jnp.dot(pcn, up, precision=hp, preferred_element_type=f32),
                        precision=hp, preferred_element_type=f32)
        cdf_t = jnp.dot(lo,
                        jnp.dot(tcn, up, precision=hp, preferred_element_type=f32),
                        precision=hp, preferred_element_type=f32)
        cdfp_ref[...] = cdf_p                              # rows sliced per chunk

        def chunk_body(c, acc):
            i0 = pl.multiple_of(c * ch, ch)
            px_c = s_ref[bi, 0, pl.ds(i0, ch), :].astype(f32)   # (ch, N)
            py_c = s_ref[bi, 1, pl.ds(i0, ch), :].astype(f32)   # (ch, N)
            cp_c = cdfp_ref[pl.ds(i0, ch), :]                   # (ch, N)
            dx = px_c[:, :, None] - tx[None, :, :]              # (ch, N, N)
            dy = py_c[:, :, None] - ty[None, :, :]
            gd = jnp.sqrt(dx * dx + dy * dy)
            dc = cp_c[:, :, None] - cdf_t[None, :, :]
            # Reduce only the leading (i-chunk) axis here: cheap VPU adds.
            return acc + jnp.sum(gd * dc * dc, axis=0)          # (N, N)

        acc = lax.fori_loop(0, n_chunks, chunk_body,
                            jnp.zeros((n, n), f32),
                            unroll=(n_chunks <= 4))
        # One sublane (j) reduce per image; k stays on lanes for the store.
        out_ref[bi] = jnp.sum(acc, axis=0, keepdims=True)       # (1, N)


def emd_loss_2d_pallas(student_hist, teacher_hist):
    assert student_hist.shape == teacher_hist.shape and student_hist.ndim == 4
    B, H, W, C = student_hist.shape
    assert H == W, "EMDLoss2D broadcasting requires a square N x N histogram grid"
    assert C >= 2
    N = H

    # Single channel-major transpose per histogram (replaces 6 slice+cast copies);
    # keep native dtype on the HBM side, cast inside the kernel.
    s_cm = jnp.moveaxis(student_hist, -1, 1)   # (B, C, N, N)
    t_cm = jnp.moveaxis(teacher_hist, -1, 1)   # (B, C, N, N)

    # Triangular cumsum operators, built once, resident in VMEM across the grid.
    lo = jnp.tril(jnp.ones((N, N), jnp.float32))   # left-mult  -> cumsum dim=-2
    up = jnp.triu(jnp.ones((N, N), jnp.float32))   # right-mult -> cumsum dim=-1

    bb = _pick_batch_block(B, N)       # images per grid step
    ch = _pick_i_chunk(N)              # contraction rows per chunk
    n_chunks = N // ch

    kernel = functools.partial(_emd2d_kernel, n=N, bb=bb, ch=ch,
                               n_chunks=n_chunks, count_ch=C - 1)

    itemsize = jnp.dtype(student_hist.dtype).itemsize
    cost = pl.CostEstimate(
        flops=int(B * (14 * N ** 3 + 8 * N ** 3)),     # contraction + CDF matmuls
        transcendentals=int(B * N ** 3),               # the sqrt
        bytes_accessed=int(2 * B * C * N * N * itemsize + 2 * N * N * 4 + B * N * 4),
    )

    partials = pl.pallas_call(
        kernel,
        out_shape=jax.ShapeDtypeStruct((B, 1, N), jnp.float32),
        grid_spec=pltpu.PrefetchScalarGridSpec(
            num_scalar_prefetch=0,
            grid=(B // bb,),
            in_specs=[
                pl.BlockSpec((bb, C, N, N), lambda g: (g, 0, 0, 0)),
                pl.BlockSpec((bb, C, N, N), lambda g: (g, 0, 0, 0)),
                pl.BlockSpec((N, N), lambda g: (0, 0)),
                pl.BlockSpec((N, N), lambda g: (0, 0)),
            ],
            out_specs=pl.BlockSpec((bb, 1, N), lambda g: (g, 0, 0)),
            scratch_shapes=[pltpu.VMEM((N, N), jnp.float32)],
        ),
        compiler_params=pltpu.CompilerParams(
            dimension_semantics=("parallel",),   # no carried state -> megacore OK
        ),
        cost_estimate=cost,
    )(s_cm, t_cm, lo, up)

    # mean over the (1, 1, B, N) emd tensor of the PyTorch reference.
    return jnp.sum(partials) / jnp.float32(B * N)


def emd_loss_2d_ref(student_hist, teacher_hist):
    pc = student_hist[..., -1]
    tc = teacher_hist[..., -1]
    px = student_hist[..., 0]
    py = student_hist[..., 1]
    tx = teacher_hist[..., 0]
    ty = teacher_hist[..., 1]
    pc = pc / (jnp.sum(pc, axis=(-1, -2), keepdims=True) + 1e-6)
    tc = tc / (jnp.sum(tc, axis=(-1, -2), keepdims=True) + 1e-6)
    cdf_p = jnp.cumsum(jnp.cumsum(pc, axis=-1), axis=-2)
    cdf_t = jnp.cumsum(jnp.cumsum(tc, axis=-1), axis=-2)
    dx = px[..., :, :, None] - tx[..., None, :, :]
    dy = py[..., :, :, None] - ty[..., None, :, :]
    gd = jnp.sqrt(dx * dx + dy * dy)
    dc = cdf_p[..., :, :, None] - cdf_t[..., None, :, :]
    emd = jnp.sum(gd * dc * dc, axis=(-1, -2))   # (B, N)
    return jnp.mean(emd)


if __name__ == "__main__":
    key = jax.random.PRNGKey(0)
    k1, k2, k3, k4 = jax.random.split(key, 4)

    # (batch, N, N, 3) histograms; channels = [bin_center_x, bin_center_y, count]
    B, N = 2, 8
    s_centers = jax.random.normal(k1, (B, N, N, 2), dtype=jnp.float32)
    s_counts = jax.random.uniform(k2, (B, N, N, 1), dtype=jnp.float32)
    t_centers = jax.random.normal(k3, (B, N, N, 2), dtype=jnp.float32)
    t_counts = jax.random.uniform(k4, (B, N, N, 1), dtype=jnp.float32)
    student_hist = jnp.concatenate([s_centers, s_counts], axis=-1)
    teacher_hist = jnp.concatenate([t_centers, t_counts], axis=-1)

    loss = jax.block_until_ready(emd_loss_2d_pallas(student_hist, teacher_hist))
    ref = jax.block_until_ready(emd_loss_2d_ref(student_hist, teacher_hist))

    np.testing.assert_allclose(np.asarray(loss), np.asarray(ref),
                               rtol=5e-5, atol=1e-6)
    print("KERNEL_OK")
</pallas_src>

<mosaic_0001>
module attributes {stable_mosaic.version = 11 : i64} {
  func.func @_emd2d_kernel(%arg0: i32, %arg1: memref<2x3x8x8xf32, #tpu.memory_space<vmem>>, %arg2: memref<2x3x8x8xf32, #tpu.memory_space<vmem>>, %arg3: memref<8x8xf32, #tpu.memory_space<vmem>>, %arg4: memref<8x8xf32, #tpu.memory_space<vmem>>, %arg5: memref<2x1x8xf32, #tpu.memory_space<vmem>>, %arg6: memref<8x8xf32, #tpu.memory_space<vmem>>) attributes {dimension_semantics = [#tpu.dimension_semantics<parallel>], iteration_bounds = array<i64: 1>, scalar_prefetch = 0 : i64, scratch_operands = 1 : i64, tpu.core_type = #tpu.core_type<tc>, window_params = [{transform_indices = @transform_0, window_bounds = array<i64: 2, 3, 8, 8>}, {transform_indices = @transform_1, window_bounds = array<i64: 2, 3, 8, 8>}, {pipeline_mode = #tpu.pipeline_mode<synchronous>, transform_indices = @transform_2, window_bounds = array<i64: 8, 8>}, {pipeline_mode = #tpu.pipeline_mode<synchronous>, transform_indices = @transform_3, window_bounds = array<i64: 8, 8>}, {transform_indices = @transform_4, window_bounds = array<i64: 2, 1, 8>}]} {
    %c0 = arith.constant 0 : index
    %c0_0 = arith.constant 0 : index
    %0 = vector.load %arg3[%c0, %c0_0] : memref<8x8xf32, #tpu.memory_space<vmem>>, vector<8x8xf32>
    %c0_1 = arith.constant 0 : index
    %c0_2 = arith.constant 0 : index
    %1 = vector.load %arg4[%c0_1, %c0_2] : memref<8x8xf32, #tpu.memory_space<vmem>>, vector<8x8xf32>
    %c0_3 = arith.constant 0 : index
    %c2 = arith.constant 2 : index
    %c0_4 = arith.constant 0 : index
    %c0_5 = arith.constant 0 : index
    %2 = vector.load %arg1[%c0_3, %c2, %c0_4, %c0_5] : memref<2x3x8x8xf32, #tpu.memory_space<vmem>>, vector<1x1x8x8xf32>
    %3 = vector.shape_cast %2 : vector<1x1x8x8xf32> to vector<8x8xf32>
    %c0_6 = arith.constant 0 : index
    %c2_7 = arith.constant 2 : index
    %c0_8 = arith.constant 0 : index
    %c0_9 = arith.constant 0 : index
    %4 = vector.load %arg2[%c0_6, %c2_7, %c0_8, %c0_9] : memref<2x3x8x8xf32, #tpu.memory_space<vmem>>, vector<1x1x8x8xf32>
    %5 = vector.shape_cast %4 : vector<1x1x8x8xf32> to vector<8x8xf32>
    %c0_10 = arith.constant 0 : index
    %c0_11 = arith.constant 0 : index
    %c0_12 = arith.constant 0 : index
    %c0_13 = arith.constant 0 : index
    %6 = vector.load %arg2[%c0_10, %c0_11, %c0_12, %c0_13] : memref<2x3x8x8xf32, #tpu.memory_space<vmem>>, vector<1x1x8x8xf32>
    %7 = vector.shape_cast %6 : vector<1x1x8x8xf32> to vector<8x8xf32>
    %c0_14 = arith.constant 0 : index
    %c1 = arith.constant 1 : index
    %c0_15 = arith.constant 0 : index
    %c0_16 = arith.constant 0 : index
    %8 = vector.load %arg2[%c0_14, %c1, %c0_15, %c0_16] : memref<2x3x8x8xf32, #tpu.memory_space<vmem>>, vector<1x1x8x8xf32>
    %9 = vector.shape_cast %8 : vector<1x1x8x8xf32> to vector<8x8xf32>
    %10 = vector.shape_cast %3 : vector<8x8xf32> to vector<1x8x8xf32>
    %cst = arith.constant dense<0.000000e+00> : vector<1xf32>
    %11 = vector.multi_reduction <add>, %10, %cst [1, 2] : vector<1x8x8xf32> to vector<1xf32>
    %12 = vector.shape_cast %11 : vector<1xf32> to vector<1x1x1xf32>
    %13 = vector.extract %12[0, 0, 0] : f32 from vector<1x1x1xf32>
    %cst_17 = arith.constant 9.99999997E-7 : f32
    %14 = arith.addf %13, %cst_17 : f32
    %15 = vector.broadcast %14 : f32 to vector<8x8xf32>
    %16 = arith.divf %3, %15 : vector<8x8xf32>
    %17 = vector.shape_cast %5 : vector<8x8xf32> to vector<1x8x8xf32>
    %cst_18 = arith.constant dense<0.000000e+00> : vector<1xf32>
    %18 = vector.multi_reduction <add>, %17, %cst_18 [1, 2] : vector<1x8x8xf32> to vector<1xf32>
    %19 = vector.shape_cast %18 : vector<1xf32> to vector<1x1x1xf32>
    %20 = vector.extract %19[0, 0, 0] : f32 from vector<1x1x1xf32>
    %cst_19 = arith.constant 9.99999997E-7 : f32
    %21 = arith.addf %20, %cst_19 : f32
    %22 = vector.broadcast %21 : f32 to vector<8x8xf32>
    %23 = arith.divf %5, %22 : vector<8x8xf32>
    %cst_20 = arith.constant dense<0.000000e+00> : vector<8x8xf32>
    %24 = tpu.matmul %16, %1, %cst_20 {dimension_numbers = #tpu.dot_dimension_numbers<[1], [0], [0], [1], [0, 0, 1, 1], [], []>, precision = #tpu.contract_precision<fp32>} : vector<8x8xf32>, vector<8x8xf32>, vector<8x8xf32> -> vector<8x8xf32>
    %cst_21 = arith.constant dense<0.000000e+00> : vector<8x8xf32>
    %25 = tpu.matmul %0, %24, %cst_21 {dimension_numbers = #tpu.dot_dimension_numbers<[1], [0], [0], [1], [0, 0, 1, 1], [], []>, precision = #tpu.contract_precision<fp32>} : vector<8x8xf32>, vector<8x8xf32>, vector<8x8xf32> -> vector<8x8xf32>
    %cst_22 = arith.constant dense<0.000000e+00> : vector<8x8xf32>
    %26 = tpu.matmul %23, %1, %cst_22 {dimension_numbers = #tpu.dot_dimension_numbers<[1], [0], [0], [1], [0, 0, 1, 1], [], []>, precision = #tpu.contract_precision<fp32>} : vector<8x8xf32>, vector<8x8xf32>, vector<8x8xf32> -> vector<8x8xf32>
    %cst_23 = arith.constant dense<0.000000e+00> : vector<8x8xf32>
    %27 = tpu.matmul %0, %26, %cst_23 {dimension_numbers = #tpu.dot_dimension_numbers<[1], [0], [0], [1], [0, 0, 1, 1], [], []>, precision = #tpu.contract_precision<fp32>} : vector<8x8xf32>, vector<8x8xf32>, vector<8x8xf32> -> vector<8x8xf32>
    %c0_24 = arith.constant 0 : index
    %c0_25 = arith.constant 0 : index
    %28 = vector.load %arg6[%c0_24, %c0_25] : memref<8x8xf32, #tpu.memory_space<vmem>>, vector<8x8xf32>
    tpu.vector_store %arg6[%c0_24, %c0_25], %25 {strides = array<i32>} : memref<8x8xf32, #tpu.memory_space<vmem>>, vector<8x8xf32>,
    %cst_26 = arith.constant 0.000000e+00 : f32
    %29 = vector.broadcast %cst_26 : f32 to vector<8x8xf32>
    %c0_i32 = arith.constant 0 : i32
    %c8_i32 = arith.constant 8 : i32
    %30 = arith.muli %c0_i32, %c8_i32 : i32
    %31 = tpu.assume_multiple %30, 8 : i32
    %c0_27 = arith.constant 0 : index
    %c0_28 = arith.constant 0 : index
    %32 = arith.index_cast %31 : i32 to index
    %c0_29 = arith.constant 0 : index
    %33 = vector.load %arg1[%c0_27, %c0_28, %32, %c0_29] : memref<2x3x8x8xf32, #tpu.memory_space<vmem>>, vector<1x1x8x8xf32>
    %34 = vector.shape_cast %33 : vector<1x1x8x8xf32> to vector<8x8xf32>
    %c0_30 = arith.constant 0 : index
    %c1_31 = arith.constant 1 : index
    %35 = arith.index_cast %31 : i32 to index
    %c0_32 = arith.constant 0 : index
    %36 = vector.load %arg1[%c0_30, %c1_31, %35, %c0_32] : memref<2x3x8x8xf32, #tpu.memory_space<vmem>>, vector<1x1x8x8xf32>
    %37 = vector.shape_cast %36 : vector<1x1x8x8xf32> to vector<8x8xf32>
    %38 = arith.index_cast %31 : i32 to index
    %c0_33 = arith.constant 0 : index
    %39 = vector.load %arg6[%38, %c0_33] : memref<8x8xf32, #tpu.memory_space<vmem>>, vector<8x8xf32>
    %40 = vector.shape_cast %34 : vector<8x8xf32> to vector<8x8x1xf32>
    %41 = vector.shape_cast %7 : vector<8x8xf32> to vector<1x8x8xf32>
    %42 = vector.broadcast %40 : vector<8x8x1xf32> to vector<8x8x8xf32>
    %43 = vector.broadcast %41 : vector<1x8x8xf32> to vector<8x8x8xf32>
    %44 = arith.subf %42, %43 : vector<8x8x8xf32>
    %45 = vector.shape_cast %37 : vector<8x8xf32> to vector<8x8x1xf32>
    %46 = vector.shape_cast %9 : vector<8x8xf32> to vector<1x8x8xf32>
    %47 = vector.broadcast %45 : vector<8x8x1xf32> to vector<8x8x8xf32>
    %48 = vector.broadcast %46 : vector<1x8x8xf32> to vector<8x8x8xf32>
    %49 = arith.subf %47, %48 : vector<8x8x8xf32>
    %50 = arith.mulf %44, %44 : vector<8x8x8xf32>
    %51 = arith.mulf %49, %49 : vector<8x8x8xf32>
    %52 = arith.addf %50, %51 : vector<8x8x8xf32>
    %53 = math.sqrt %52 : vector<8x8x8xf32>
    %54 = vector.shape_cast %39 : vector<8x8xf32> to vector<8x8x1xf32>
    %55 = vector.shape_cast %27 : vector<8x8xf32> to vector<1x8x8xf32>
    %56 = vector.broadcast %54 : vector<8x8x1xf32> to vector<8x8x8xf32>
    %57 = vector.broadcast %55 : vector<1x8x8xf32> to vector<8x8x8xf32>
    %58 = arith.subf %56, %57 : vector<8x8x8xf32>
    %59 = arith.mulf %53, %58 : vector<8x8x8xf32>
    %60 = arith.mulf %59, %58 : vector<8x8x8xf32>
    %cst_34 = arith.constant dense<0.000000e+00> : vector<8x8xf32>
    %61 = vector.multi_reduction <add>, %60, %cst_34 [0] : vector<8x8x8xf32> to vector<8x8xf32>
    %62 = arith.addf %29, %61 : vector<8x8xf32>
    %c1_i32 = arith.constant 1 : i32
    %cst_35 = arith.constant dense<0.000000e+00> : vector<8xf32>
    %63 = vector.multi_reduction <add>, %62, %cst_35 [0] : vector<8x8xf32> to vector<8xf32>
    %64 = vector.shape_cast %63 : vector<8xf32> to vector<1x8xf32>
    %c0_36 = arith.constant 0 : index
    %c0_37 = arith.constant 0 : index
    %c0_38 = arith.constant 0 : index
    %65 = vector.load %arg5[%c0_36, %c0_37, %c0_38] : memref<2x1x8xf32, #tpu.memory_space<vmem>>, vector<1x1x8xf32>
    %66 = vector.shape_cast %65 : vector<1x1x8xf32> to vector<1x8xf32>
    %67 = vector.shape_cast %64 : vector<1x8xf32> to vector<1x1x8xf32>
    tpu.vector_store %arg5[%c0_36, %c0_37, %c0_38], %67 {strides = array<i32>} : memref<2x1x8xf32, #tpu.memory_space<vmem>>, vector<1x1x8xf32>,
    %c1_39 = arith.constant 1 : index
    %c2_40 = arith.constant 2 : index
    %c0_41 = arith.constant 0 : index
    %c0_42 = arith.constant 0 : index
    %68 = vector.load %arg1[%c1_39, %c2_40, %c0_41, %c0_42] : memref<2x3x8x8xf32, #tpu.memory_space<vmem>>, vector<1x1x8x8xf32>
    %69 = vector.shape_cast %68 : vector<1x1x8x8xf32> to vector<8x8xf32>
    %c1_43 = arith.constant 1 : index
    %c2_44 = arith.constant 2 : index
    %c0_45 = arith.constant 0 : index
    %c0_46 = arith.constant 0 : index
    %70 = vector.load %arg2[%c1_43, %c2_44, %c0_45, %c0_46] : memref<2x3x8x8xf32, #tpu.memory_space<vmem>>, vector<1x1x8x8xf32>
    %71 = vector.shape_cast %70 : vector<1x1x8x8xf32> to vector<8x8xf32>
    %c1_47 = arith.constant 1 : index
    %c0_48 = arith.constant 0 : index
    %c0_49 = arith.constant 0 : index
    %c0_50 = arith.constant 0 : index
    %72 = vector.load %arg2[%c1_47, %c0_48, %c0_49, %c0_50] : memref<2x3x8x8xf32, #tpu.memory_space<vmem>>, vector<1x1x8x8xf32>
    %73 = vector.shape_cast %72 : vector<1x1x8x8xf32> to vector<8x8xf32>
    %c1_51 = arith.constant 1 : index
    %c1_52 = arith.constant 1 : index
    %c0_53 = arith.constant 0 : index
    %c0_54 = arith.constant 0 : index
    %74 = vector.load %arg2[%c1_51, %c1_52, %c0_53, %c0_54] : memref<2x3x8x8xf32, #tpu.memory_space<vmem>>, vector<1x1x8x8xf32>
    %75 = vector.shape_cast %74 : vector<1x1x8x8xf32> to vector<8x8xf32>
    %76 = vector.shape_cast %69 : vector<8x8xf32> to vector<1x8x8xf32>
    %cst_55 = arith.constant dense<0.000000e+00> : vector<1xf32>
    %77 = vector.multi_reduction <add>, %76, %cst_55 [1, 2] : vector<1x8x8xf32> to vector<1xf32>
    %78 = vector.shape_cast %77 : vector<1xf32> to vector<1x1x1xf32>
    %79 = vector.extract %78[0, 0, 0] : f32 from vector<1x1x1xf32>
    %cst_56 = arith.constant 9.99999997E-7 : f32
    %80 = arith.addf %79, %cst_56 : f32
    %81 = vector.broadcast %80 : f32 to vector<8x8xf32>
    %82 = arith.divf %69, %81 : vector<8x8xf32>
    %83 = vector.shape_cast %71 : vector<8x8xf32> to vector<1x8x8xf32>
    %cst_57 = arith.constant dense<0.000000e+00> : vector<1xf32>
    %84 = vector.multi_reduction <add>, %83, %cst_57 [1, 2] : vector<1x8x8xf32> to vector<1xf32>
    %85 = vector.shape_cast %84 : vector<1xf32> to vector<1x1x1xf32>
    %86 = vector.extract %85[0, 0, 0] : f32 from vector<1x1x1xf32>
    %cst_58 = arith.constant 9.99999997E-7 : f32
    %87 = arith.addf %86, %cst_58 : f32
    %88 = vector.broadcast %87 : f32 to vector<8x8xf32>
    %89 = arith.divf %71, %88 : vector<8x8xf32>
    %cst_59 = arith.constant dense<0.000000e+00> : vector<8x8xf32>
    %90 = tpu.matmul %82, %1, %cst_59 {dimension_numbers = #tpu.dot_dimension_numbers<[1], [0], [0], [1], [0, 0, 1, 1], [], []>, precision = #tpu.contract_precision<fp32>} : vector<8x8xf32>, vector<8x8xf32>, vector<8x8xf32> -> vector<8x8xf32>
    %cst_60 = arith.constant dense<0.000000e+00> : vector<8x8xf32>
    %91 = tpu.matmul %0, %90, %cst_60 {dimension_numbers = #tpu.dot_dimension_numbers<[1], [0], [0], [1], [0, 0, 1, 1], [], []>, precision = #tpu.contract_precision<fp32>} : vector<8x8xf32>, vector<8x8xf32>, vector<8x8xf32> -> vector<8x8xf32>
    %cst_61 = arith.constant dense<0.000000e+00> : vector<8x8xf32>
    %92 = tpu.matmul %89, %1, %cst_61 {dimension_numbers = #tpu.dot_dimension_numbers<[1], [0], [0], [1], [0, 0, 1, 1], [], []>, precision = #tpu.contract_precision<fp32>} : vector<8x8xf32>, vector<8x8xf32>, vector<8x8xf32> -> vector<8x8xf32>
    %cst_62 = arith.constant dense<0.000000e+00> : vector<8x8xf32>
    %93 = tpu.matmul %0, %92, %cst_62 {dimension_numbers = #tpu.dot_dimension_numbers<[1], [0], [0], [1], [0, 0, 1, 1], [], []>, precision = #tpu.contract_precision<fp32>} : vector<8x8xf32>, vector<8x8xf32>, vector<8x8xf32> -> vector<8x8xf32>
    %c0_63 = arith.constant 0 : index
    %c0_64 = arith.constant 0 : index
    %94 = vector.load %arg6[%c0_63, %c0_64] : memref<8x8xf32, #tpu.memory_space<vmem>>, vector<8x8xf32>
    tpu.vector_store %arg6[%c0_63, %c0_64], %91 {strides = array<i32>} : memref<8x8xf32, #tpu.memory_space<vmem>>, vector<8x8xf32>,
    %cst_65 = arith.constant 0.000000e+00 : f32
    %95 = vector.broadcast %cst_65 : f32 to vector<8x8xf32>
    %c0_i32_66 = arith.constant 0 : i32
    %c8_i32_67 = arith.constant 8 : i32
    %96 = arith.muli %c0_i32_66, %c8_i32_67 : i32
    %97 = tpu.assume_multiple %96, 8 : i32
    %c1_68 = arith.constant 1 : index
    %c0_69 = arith.constant 0 : index
    %98 = arith.index_cast %97 : i32 to index
    %c0_70 = arith.constant 0 : index
    %99 = vector.load %arg1[%c1_68, %c0_69, %98, %c0_70] : memref<2x3x8x8xf32, #tpu.memory_space<vmem>>, vector<1x1x8x8xf32>
    %100 = vector.shape_cast %99 : vector<1x1x8x8xf32> to vector<8x8xf32>
    %c1_71 = arith.constant 1 : index
    %c1_72 = arith.constant 1 : index
    %101 = arith.index_cast %97 : i32 to index
    %c0_73 = arith.constant 0 : index
    %102 = vector.load %arg1[%c1_71, %c1_72, %101, %c0_73] : memref<2x3x8x8xf32, #tpu.memory_space<vmem>>, vector<1x1x8x8xf32>
    %103 = vector.shape_cast %102 : vector<1x1x8x8xf32> to vector<8x8xf32>
    %104 = arith.index_cast %97 : i32 to index
    %c0_74 = arith.constant 0 : index
    %105 = vector.load %arg6[%104, %c0_74] : memref<8x8xf32, #tpu.memory_space<vmem>>, vector<8x8xf32>
    %106 = vector.shape_cast %100 : vector<8x8xf32> to vector<8x8x1xf32>
    %107 = vector.shape_cast %73 : vector<8x8xf32> to vector<1x8x8xf32>
    %108 = vector.broadcast %106 : vector<8x8x1xf32> to vector<8x8x8xf32>
    %109 = vector.broadcast %107 : vector<1x8x8xf32> to vector<8x8x8xf32>
    %110 = arith.subf %108, %109 : vector<8x8x8xf32>
    %111 = vector.shape_cast %103 : vector<8x8xf32> to vector<8x8x1xf32>
    %112 = vector.shape_cast %75 : vector<8x8xf32> to vector<1x8x8xf32>
    %113 = vector.broadcast %111 : vector<8x8x1xf32> to vector<8x8x8xf32>
    %114 = vector.broadcast %112 : vector<1x8x8xf32> to vector<8x8x8xf32>
    %115 = arith.subf %113, %114 : vector<8x8x8xf32>
    %116 = arith.mulf %110, %110 : vector<8x8x8xf32>
    %117 = arith.mulf %115, %115 : vector<8x8x8xf32>
    %118 = arith.addf %116, %117 : vector<8x8x8xf32>
    %119 = math.sqrt %118 : vector<8x8x8xf32>
    %120 = vector.shape_cast %105 : vector<8x8xf32> to vector<8x8x1xf32>
    %121 = vector.shape_cast %93 : vector<8x8xf32> to vector<1x8x8xf32>
    %122 = vector.broadcast %120 : vector<8x8x1xf32> to vector<8x8x8xf32>
    %123 = vector.broadcast %121 : vector<1x8x8xf32> to vector<8x8x8xf32>
    %124 = arith.subf %122, %123 : vector<8x8x8xf32>
    %125 = arith.mulf %119, %124 : vector<8x8x8xf32>
    %126 = arith.mulf %125, %124 : vector<8x8x8xf32>
    %cst_75 = arith.constant dense<0.000000e+00> : vector<8x8xf32>
    %127 = vector.multi_reduction <add>, %126, %cst_75 [0] : vector<8x8x8xf32> to vector<8x8xf32>
    %128 = arith.addf %95, %127 : vector<8x8xf32>
    %c1_i32_76 = arith.constant 1 : i32
    %cst_77 = arith.constant dense<0.000000e+00> : vector<8xf32>
    %129 = vector.multi_reduction <add>, %128, %cst_77 [0] : vector<8x8xf32> to vector<8xf32>
    %130 = vector.shape_cast %129 : vector<8xf32> to vector<1x8xf32>
    %c1_78 = arith.constant 1 : index
    %c0_79 = arith.constant 0 : index
    %c0_80 = arith.constant 0 : index
    %131 = vector.load %arg5[%c1_78, %c0_79, %c0_80] : memref<2x1x8xf32, #tpu.memory_space<vmem>>, vector<1x1x8xf32>
    %132 = vector.shape_cast %131 : vector<1x1x8xf32> to vector<1x8xf32>
    %133 = vector.shape_cast %130 : vector<1x8xf32> to vector<1x1x8xf32>
    tpu.vector_store %arg5[%c1_78, %c0_79, %c0_80], %133 {strides = array<i32>} : memref<2x1x8xf32, #tpu.memory_space<vmem>>, vector<1x1x8xf32>,
    return
  }
  func.func @transform_0(%arg0: i32) -> (i32, i32, i32, i32) {
    %c0_i32 = arith.constant 0 : i32
    %c0_i32_0 = arith.constant 0 : i32
    %c0_i32_1 = arith.constant 0 : i32
    %c0_i32_2 = arith.constant 0 : i32
    return %arg0, %c0_i32, %c0_i32_0, %c0_i32_1 : i32, i32, i32, i32
  }
  func.func @transform_1(%arg0: i32) -> (i32, i32, i32, i32) {
    %c0_i32 = arith.constant 0 : i32
    %c0_i32_0 = arith.constant 0 : i32
    %c0_i32_1 = arith.constant 0 : i32
    %c0_i32_2 = arith.constant 0 : i32
    return %arg0, %c0_i32, %c0_i32_0, %c0_i32_1 : i32, i32, i32, i32
  }
  func.func @transform_2(%arg0: i32) -> (i32, i32) {
    %c0_i32 = arith.constant 0 : i32
    %c0_i32_0 = arith.constant 0 : i32
    %c0_i32_1 = arith.constant 0 : i32
    return %c0_i32, %c0_i32_0 : i32, i32
  }
  func.func @transform_3(%arg0: i32) -> (i32, i32) {
    %c0_i32 = arith.constant 0 : i32
    %c0_i32_0 = arith.constant 0 : i32
    %c0_i32_1 = arith.constant 0 : i32
    return %c0_i32, %c0_i32_0 : i32, i32
  }
  func.func @transform_4(%arg0: i32) -> (i32, i32, i32) {
    %c0_i32 = arith.constant 0 : i32
    %c0_i32_0 = arith.constant 0 : i32
    %c0_i32_1 = arith.constant 0 : i32
    return %arg0, %c0_i32, %c0_i32_0 : i32, i32, i32
  }
}

</mosaic_0001>

<llo_original>
// kernel: tpu_custom_call.1
$region0: #{tpu_custom_call.1}
  #allocation0 [shape = 'u32[]', space=smem, size = 0x4, offset = 0x4, fixed_abs, tag = 'smem constant byte address 0x4 - core index']
  #allocation1 [shape = 'u32[72,128]{1,0:T(1,128)}', space=vmem, size = 0x9000, scoped, tag = 'internal scratch']
  #allocation2 [shape = 'f32[8,8]{1,0:T(8,128)}', space=vmem, size = 0x1000, scoped, tag = 'scratch operand']
  %s0 = inlined_call_operand.hbm [shape: f32[2,3,8,8], index: 0, kind: input, shape index: {}]
  %s1 = inlined_call_operand.hbm [shape: f32[2,3,8,8], index: 1, kind: input, shape index: {}]
  %s2 = inlined_call_operand.hbm [shape: f32[8,8], index: 2, kind: input, shape index: {}]
  %s3 = inlined_call_operand.hbm [shape: f32[8,8], index: 3, kind: input, shape index: {}]
  %s4 = inlined_call_operand.hbm [shape: f32[2,1,8], index: 4, kind: output, shape index: {}]
  %s5 = sld [smem:[#allocation0]]
  $region42: #{tpu_custom_call.1} parent=0
    _
  %s7 = ssub.s32 1, %s5
  %s8 = scalar_select 0, %s7, %s5
  $region1: #{tpu_custom_call.1} parent=0
    #allocation3 [shape = 'u8[24576]{0}', space=vmem, size = 0x6000, scoped, tag = 'input window, operand 0, single buffered']
    #allocation4 [shape = 's32[1]{0}', space=sflag, size = 0x4, scoped, tag = 'scoped memory for tpu_custom_call.1']
    #allocation5 [shape = 's32[1]{0}', space=sflag, size = 0x4, scoped, tag = 'scoped memory for tpu_custom_call.1']
    #allocation6 [shape = 'u8[24576]{0}', space=vmem, size = 0x6000, scoped, tag = 'input window, operand 1, single buffered']
    #allocation7 [shape = 's32[1]{0}', space=sflag, size = 0x4, scoped, tag = 'scoped memory for tpu_custom_call.1']
    #allocation8 [shape = 'u8[4096]{0}', space=vmem, size = 0x1000, scoped, tag = 'input window, operand 2, single buffered']
    #allocation9 [shape = 'u8[4096]{0}', space=vmem, size = 0x1000, scoped, tag = 'input window, operand 3, single buffered']
    #allocation10 [shape = 's32[1]{0}', space=sflag, size = 0x4, scoped, tag = 'scoped memory for tpu_custom_call.1']
    #allocation11 [shape = 'u8[1024]{0}', space=vmem, size = 0x400, scoped, tag = 'output window, operand 0, single buffered']
    %9 = vsyncpa [#allocation4], 0
    %10 = vsyncpa [#allocation7], 0
    %11 = vsyncpa [#allocation10], 0
    %12 = vsyncpa [#allocation5], 0
    // Predicated region
    $region2: #{tpu_custom_call.1} parent=1 // pred_check
      _
    $region3: #{tpu_custom_call.1} parent=1 // pred_check_branch
      %14 = sbr.rel (0) target = $region5
    $region4: #{tpu_custom_call.1} parent=1 // pred_region
      %16 = vsyncadd [#allocation4], 0
      %s17 = sshll.u32 %s0, 4
      %s18 = int_to_ptr.hbm [resolvable:$true] %s17
      %s19 = sshll.u32 [#allocation3], 4
      %s20 = int_to_ptr.vmem [resolvable:$true] %s19
      %25 = dma.hbm_to_vmem [thread:$0]  %s18, 768, %s20, [#allocation4], 128, 128, 8
    $region5: #{tpu_custom_call.1} parent=1 // pred_fallthru
      _
    // Predicated region
    $region6: #{tpu_custom_call.1} parent=1 // pred_check
      _
    $region7: #{tpu_custom_call.1} parent=1 // pred_check_branch
      %27 = sbr.rel (0) target = $region9
    $region8: #{tpu_custom_call.1} parent=1 // pred_region
      %29 = vsyncadd [#allocation7], 0
      %s30 = sshll.u32 %s1, 4
      %s31 = int_to_ptr.hbm [resolvable:$true] %s30
      %s32 = sshll.u32 [#allocation6], 4
      %s33 = int_to_ptr.vmem [resolvable:$true] %s32
      %38 = dma.hbm_to_vmem [thread:$0]  %s31, 768, %s33, [#allocation7], 128, 128, 8
    $region9: #{tpu_custom_call.1} parent=1 // pred_fallthru
      _
    // Predicated region
    $region10: #{tpu_custom_call.1} parent=1 // pred_check
      _
    $region11: #{tpu_custom_call.1} parent=1 // pred_check_branch
      %40 = sbr.rel (0) target = $region13
    $region12: #{tpu_custom_call.1} parent=1 // pred_region
      %42 = vsyncadd [#allocation7], 0
      %s44 = sshll.u32 %s2, 4
      %s45 = int_to_ptr.hbm [resolvable:$true] %s44
      %s46 = sshll.u32 [#allocation8], 4
      %s47 = int_to_ptr.vmem [resolvable:$true] %s46
      %49 = dma.hbm_to_vmem [thread:$0]  %s45, 128, %s47, [#allocation7]
    $region13: #{tpu_custom_call.1} parent=1 // pred_fallthru
      _
    // Predicated region
    $region14: #{tpu_custom_call.1} parent=1 // pred_check
      _
    $region15: #{tpu_custom_call.1} parent=1 // pred_check_branch
      %51 = sbr.rel (0) target = $region17
    $region16: #{tpu_custom_call.1} parent=1 // pred_region
      %53 = vsyncadd [#allocation10], 0
      %s55 = sshll.u32 %s3, 4
      %s56 = int_to_ptr.hbm [resolvable:$true] %s55
      %s57 = sshll.u32 [#allocation9], 4
      %s58 = int_to_ptr.vmem [resolvable:$true] %s57
      %60 = dma.hbm_to_vmem [thread:$0]  %s56, 128, %s58, [#allocation10]
    $region17: #{tpu_custom_call.1} parent=1 // pred_fallthru
      _
    // Predicated region
    $region18: #{tpu_custom_call.1} parent=1 // pred_check
      _
    $region19: #{tpu_custom_call.1} parent=1 // pred_check_branch
      %62 = sbr.rel (0) target = $region21
    $region20: #{tpu_custom_call.1} parent=1 // pred_region
      %64 = dma.done [#allocation4], 768
    $region21: #{tpu_custom_call.1} parent=1 // pred_fallthru
      _
    // Predicated region
    $region22: #{tpu_custom_call.1} parent=1 // pred_check
      _
    $region23: #{tpu_custom_call.1} parent=1 // pred_check_branch
      %66 = sbr.rel (0) target = $region25
    $region24: #{tpu_custom_call.1} parent=1 // pred_region
      %68 = dma.done [#allocation7], 768
    $region25: #{tpu_custom_call.1} parent=1 // pred_fallthru
      _
    // Predicated region
    $region26: #{tpu_custom_call.1} parent=1 // pred_check
      _
    $region27: #{tpu_custom_call.1} parent=1 // pred_check_branch
      %70 = sbr.rel (0) target = $region29
    $region28: #{tpu_custom_call.1} parent=1 // pred_region
      %72 = dma.done [#allocation7], 128
    $region29: #{tpu_custom_call.1} parent=1 // pred_fallthru
      _
    // Predicated region
    $region30: #{tpu_custom_call.1} parent=1 // pred_check
      _
    $region31: #{tpu_custom_call.1} parent=1 // pred_check_branch
      %74 = sbr.rel (0) target = $region33
    $region32: #{tpu_custom_call.1} parent=1 // pred_region
      %76 = dma.done [#allocation10], 128
    $region33: #{tpu_custom_call.1} parent=1 // pred_fallthru
      _
    %v77 = vld [vmem:[#allocation8] sm:$0xff]
    %v78 = vld [vmem:[#allocation9] sm:$0xff]
    %s79 = scalar_lea.vmem [#allocation3], 16
    %v80 = vld [vmem:[%s79] sm:$0xff]
    %s81 = scalar_lea.vmem [#allocation6], 16
    %v82 = vld [vmem:[%s81] sm:$0xff]
    %v83 = vld [vmem:[#allocation6] sm:$0xff]
    %s84 = scalar_lea.vmem [#allocation6], 8
    %v85 = vld [vmem:[%s84] sm:$0xff]
    %vm86 = vcmask 64512
    %v87 = vsel %vm86, %v80, 0.0
    %88 = vadd.xlane.f32.xlu0 %v87
    %v89 = vpop.xlane.xlu0 %88
    %v90 = vrot.slane %v89, 4
    %v91 = vadd.f32 %v89, %v90
    %v92 = vrot.slane %v91, 2
    %v93 = vadd.f32 %v91, %v92
    %v94 = vrot.slane %v93, 1
    %v95 = vadd.f32 %v93, %v94
    %s96 = vtos %v95
    %s97 = sadd.f32 %s96, 1e-06
    %v98 = vstv %s97
    %v99 = vrcp.pop %v98
    %v100 = vmul.f32 %v98, %v99
    %v101 = vsub.f32 1.0, %v100
    %v102 = vmul.f32 %v99, %v101
    %v103 = vadd.f32 %v99, %v102
    %vm104 = vweird.f32 %v98
    %vm105 = vweird.f32 %v99
    %vm106 = vmor %vm104, %vm105
    %v107 = vsel %vm106, %v99, %v103
    %v108 = vand.u32 2147483647, %v98
    %vm109 = vcmp.eq.f32.partialorder %v108, 8.507059e+37
    %v110 = vand.u32 %v98, 2147483648
    %v111 = vor.u32 1.1754944e-38, %v110
    %v112 = vsel %vm109, %v111, %v107
    %v113 = vmul.f32 %v80, %v112
    %v114 = vsel %vm86, %v82, 0.0
    %115 = vadd.xlane.f32.xlu0 %v114
    %v116 = vpop.xlane.xlu0 %115
    %v117 = vrot.slane %v116, 4
    %v118 = vadd.f32 %v116, %v117
    %v119 = vrot.slane %v118, 2
    %v120 = vadd.f32 %v118, %v119
    %v121 = vrot.slane %v120, 1
    %v122 = vadd.f32 %v120, %v121
    %s123 = vtos %v122
    %s124 = sadd.f32 %s123, 1e-06
    %v125 = vstv %s124
    %v126 = vrcp.pop %v125
    %v127 = vmul.f32 %v125, %v126
    %v128 = vsub.f32 1.0, %v127
    %v129 = vmul.f32 %v126, %v128
    %v130 = vadd.f32 %v126, %v129
    %vm131 = vweird.f32 %v125
    %vm132 = vweird.f32 %v126
    %vm133 = vmor %vm131, %vm132
    %v134 = vsel %vm133, %v126, %v130
    %v135 = vand.u32 2147483647, %v125
    %vm136 = vcmp.eq.f32.partialorder %v135, 8.507059e+37
    %v137 = vand.u32 %v125, 2147483648
    %v138 = vor.u32 1.1754944e-38, %v137
    %v139 = vsel %vm136, %v138, %v134
    %v140 = vmul.f32 %v82, %v139
    %v142 = vsel %vm86, %v113, 0
    %144 = vmatpush.msra.mxu0 0.0
    %145 = vmatpush.msra.mxu0 0.0
    %146 = vmatpush.msra.mxu0 0.0
    %147 = vmatpush.msra.mxu0 0.0
    %148 = vmatpush.msra.mxu0 0.0
    %149 = vmatpush.msra.mxu0 0.0
    %150 = vmatpush.msra.mxu0 0.0
    %151 = vmatpush.msra.mxu0 0.0
    %152 = vmatpush.msra.mxu0 0.0
    %153 = vmatpush.msra.mxu0 0.0
    %154 = vmatpush.msra.mxu0 0.0
    %155 = vmatpush.msra.mxu0 0.0
    %156 = vmatpush.msra.mxu0 0.0
    %157 = vmatpush.msra.mxu0 0.0
    %158 = vmatpush.msra.mxu0 0.0
    %v159 = vand.u32 %v78, 4294901760
    %160 = vmatpush.msra.mxu0 %v159
    %v161 = vand.u32 %v142, 4294901760
    %v162 = vsub.f32 %v142, %v161
    %v163 = vand.u32 %v162, 4294901760
    %v164 = vsub.f32 %v162, %v163
    %v165 = vand.u32 %v164, 4294901760
    %166 = vmatmul.f32.gmra.mxu0 %v165
    %v167 = vpop.f32.mrf.mxu0
    %v168 = vadd.f32 0.0, %v167
    %169 = vdwg.mxu0
    %170 = vmatpush.msra.mxu0 0.0
    %171 = vmatpush.msra.mxu0 0.0
    %172 = vmatpush.msra.mxu0 0.0
    %173 = vmatpush.msra.mxu0 0.0
    %174 = vmatpush.msra.mxu0 0.0
    %175 = vmatpush.msra.mxu0 0.0
    %176 = vmatpush.msra.mxu0 0.0
    %177 = vmatpush.msra.mxu0 0.0
    %178 = vmatpush.msra.mxu0 0.0
    %179 = vmatpush.msra.mxu0 0.0
    %180 = vmatpush.msra.mxu0 0.0
    %181 = vmatpush.msra.mxu0 0.0
    %182 = vmatpush.msra.mxu0 0.0
    %183 = vmatpush.msra.mxu0 0.0
    %184 = vmatpush.msra.mxu0 0.0
    %v185 = vand.u32 %v78, 4294901760
    %v186 = vsub.f32 %v78, %v185
    %v187 = vand.u32 %v186, 4294901760
    %v188 = vsub.f32 %v186, %v187
    %v189 = vand.u32 %v188, 4294901760
    %190 = vmatpush.msra.mxu0 %v189
    %v191 = vand.u32 %v142, 4294901760
    %192 = vmatmul.f32.gmra.mxu0 %v191
    %v193 = vpop.f32.mrf.mxu0
    %v194 = vadd.f32 %v168, %v193
    %195 = vdwg.mxu0
    %196 = vmatpush.msra.mxu0 0.0
    %197 = vmatpush.msra.mxu0 0.0
    %198 = vmatpush.msra.mxu0 0.0
    %199 = vmatpush.msra.mxu0 0.0
    %200 = vmatpush.msra.mxu0 0.0
    %201 = vmatpush.msra.mxu0 0.0
    %202 = vmatpush.msra.mxu0 0.0
    %203 = vmatpush.msra.mxu0 0.0
    %204 = vmatpush.msra.mxu0 0.0
    %205 = vmatpush.msra.mxu0 0.0
    %206 = vmatpush.msra.mxu0 0.0
    %207 = vmatpush.msra.mxu0 0.0
    %208 = vmatpush.msra.mxu0 0.0
    %209 = vmatpush.msra.mxu0 0.0
    %210 = vmatpush.msra.mxu0 0.0
    %v211 = vand.u32 %v78, 4294901760
    %v212 = vsub.f32 %v78, %v211
    %213 = vmatpush.msra.mxu0 %v212
    %v214 = vand.u32 %v142, 4294901760
    %v215 = vsub.f32 %v142, %v214
    %216 = vmatmul.f32.gmra.mxu0 %v215
    %v217 = vpop.f32.mrf.mxu0
    %v218 = vadd.f32 %v194, %v217
    %219 = vdwg.mxu0
    %220 = vmatpush.msra.mxu0 0.0
    %221 = vmatpush.msra.mxu0 0.0
    %222 = vmatpush.msra.mxu0 0.0
    %223 = vmatpush.msra.mxu0 0.0
    %224 = vmatpush.msra.mxu0 0.0
    %225 = vmatpush.msra.mxu0 0.0
    %226 = vmatpush.msra.mxu0 0.0
    %227 = vmatpush.msra.mxu0 0.0
    %228 = vmatpush.msra.mxu0 0.0
    %229 = vmatpush.msra.mxu0 0.0
    %230 = vmatpush.msra.mxu0 0.0
    %231 = vmatpush.msra.mxu0 0.0
    %232 = vmatpush.msra.mxu0 0.0
    %233 = vmatpush.msra.mxu0 0.0
    %234 = vmatpush.msra.mxu0 0.0
    %v235 = vand.u32 %v78, 4294901760
    %236 = vmatpush.msra.mxu0 %v235
    %v237 = vand.u32 %v142, 4294901760
    %v238 = vsub.f32 %v142, %v237
    %v239 = vand.u32 %v238, 4294901760
    %240 = vmatmul.f32.gmra.mxu0 %v239
    %v241 = vpop.f32.mrf.mxu0
    %v242 = vadd.f32 %v218, %v241
    %243 = vdwg.mxu0
    %244 = vmatpush.msra.mxu0 0.0
    %245 = vmatpush.msra.mxu0 0.0
    %246 = vmatpush.msra.mxu0 0.0
    %247 = vmatpush.msra.mxu0 0.0
    %248 = vmatpush.msra.mxu0 0.0
    %249 = vmatpush.msra.mxu0 0.0
    %250 = vmatpush.msra.mxu0 0.0
    %251 = vmatpush.msra.mxu0 0.0
    %252 = vmatpush.msra.mxu0 0.0
    %253 = vmatpush.msra.mxu0 0.0
    %254 = vmatpush.msra.mxu0 0.0
    %255 = vmatpush.msra.mxu0 0.0
    %256 = vmatpush.msra.mxu0 0.0
    %257 = vmatpush.msra.mxu0 0.0
    %258 = vmatpush.msra.mxu0 0.0
    %v259 = vand.u32 %v78, 4294901760
    %v260 = vsub.f32 %v78, %v259
    %v261 = vand.u32 %v260, 4294901760
    %262 = vmatpush.msra.mxu0 %v261
    %v263 = vand.u32 %v142, 4294901760
    %264 = vmatmul.f32.gmra.mxu0 %v263
    %v265 = vpop.f32.mrf.mxu0
    %v266 = vadd.f32 %v242, %v265
    %267 = vdwg.mxu0
    %268 = vmatpush.msra.mxu0 0.0
    %269 = vmatpush.msra.mxu0 0.0
    %270 = vmatpush.msra.mxu0 0.0
    %271 = vmatpush.msra.mxu0 0.0
    %272 = vmatpush.msra.mxu0 0.0
    %273 = vmatpush.msra.mxu0 0.0
    %274 = vmatpush.msra.mxu0 0.0
    %275 = vmatpush.msra.mxu0 0.0
    %276 = vmatpush.msra.mxu0 0.0
    %277 = vmatpush.msra.mxu0 0.0
    %278 = vmatpush.msra.mxu0 0.0
    %279 = vmatpush.msra.mxu0 0.0
    %280 = vmatpush.msra.mxu0 0.0
    %281 = vmatpush.msra.mxu0 0.0
    %282 = vmatpush.msra.mxu0 0.0
    %v283 = vand.u32 %v78, 4294901760
    %284 = vmatpush.msra.mxu0 %v283
    %v285 = vand.u32 %v142, 4294901760
    %286 = vmatmul.f32.gmra.mxu0 %v285
    %v287 = vpop.f32.mrf.mxu0
    %v288 = vadd.f32 %v266, %v287
    %289 = vdwg.mxu0
    %v291 = vsel %vm86, %v77, 0
    %293 = vmatpush.msra.mxu0 0.0
    %294 = vmatpush.msra.mxu0 0.0
    %295 = vmatpush.msra.mxu0 0.0
    %296 = vmatpush.msra.mxu0 0.0
    %297 = vmatpush.msra.mxu0 0.0
    %298 = vmatpush.msra.mxu0 0.0
    %299 = vmatpush.msra.mxu0 0.0
    %300 = vmatpush.msra.mxu0 0.0
    %301 = vmatpush.msra.mxu0 0.0
    %302 = vmatpush.msra.mxu0 0.0
    %303 = vmatpush.msra.mxu0 0.0
    %304 = vmatpush.msra.mxu0 0.0
    %305 = vmatpush.msra.mxu0 0.0
    %306 = vmatpush.msra.mxu0 0.0
    %307 = vmatpush.msra.mxu0 0.0
    %v308 = vand.u32 %v288, 4294901760
    %309 = vmatpush.msra.mxu0 %v308
    %v310 = vand.u32 %v291, 4294901760
    %v311 = vsub.f32 %v291, %v310
    %v312 = vand.u32 %v311, 4294901760
    %v313 = vsub.f32 %v311, %v312
    %v314 = vand.u32 %v313, 4294901760
    %315 = vmatmul.f32.gmra.mxu0 %v314
    %v316 = vpop.f32.mrf.mxu0
    %v317 = vadd.f32 0.0, %v316
    %318 = vdwg.mxu0
    %319 = vmatpush.msra.mxu0 0.0
    %320 = vmatpush.msra.mxu0 0.0
    %321 = vmatpush.msra.mxu0 0.0
    %322 = vmatpush.msra.mxu0 0.0
    %323 = vmatpush.msra.mxu0 0.0
    %324 = vmatpush.msra.mxu0 0.0
    %325 = vmatpush.msra.mxu0 0.0
    %326 = vmatpush.msra.mxu0 0.0
    %327 = vmatpush.msra.mxu0 0.0
    %328 = vmatpush.msra.mxu0 0.0
    %329 = vmatpush.msra.mxu0 0.0
    %330 = vmatpush.msra.mxu0 0.0
    %331 = vmatpush.msra.mxu0 0.0
    %332 = vmatpush.msra.mxu0 0.0
    %333 = vmatpush.msra.mxu0 0.0
    %v334 = vand.u32 %v288, 4294901760
    %v335 = vsub.f32 %v288, %v334
    %v336 = vand.u32 %v335, 4294901760
    %v337 = vsub.f32 %v335, %v336
    %v338 = vand.u32 %v337, 4294901760
    %339 = vmatpush.msra.mxu0 %v338
    %v340 = vand.u32 %v291, 4294901760
    %341 = vmatmul.f32.gmra.mxu0 %v340
    %v342 = vpop.f32.mrf.mxu0
    %v343 = vadd.f32 %v317, %v342
    %344 = vdwg.mxu0
    %345 = vmatpush.msra.mxu0 0.0
    %346 = vmatpush.msra.mxu0 0.0
    %347 = vmatpush.msra.mxu0 0.0
    %348 = vmatpush.msra.mxu0 0.0
    %349 = vmatpush.msra.mxu0 0.0
    %350 = vmatpush.msra.mxu0 0.0
    %351 = vmatpush.msra.mxu0 0.0
    %352 = vmatpush.msra.mxu0 0.0
    %353 = vmatpush.msra.mxu0 0.0
    %354 = vmatpush.msra.mxu0 0.0
    %355 = vmatpush.msra.mxu0 0.0
    %356 = vmatpush.msra.mxu0 0.0
    %357 = vmatpush.msra.mxu0 0.0
    %358 = vmatpush.msra.mxu0 0.0
    %359 = vmatpush.msra.mxu0 0.0
    %v360 = vand.u32 %v288, 4294901760
    %v361 = vsub.f32 %v288, %v360
    %362 = vmatpush.msra.mxu0 %v361
    %v363 = vand.u32 %v291, 4294901760
    %v364 = vsub.f32 %v291, %v363
    %365 = vmatmul.f32.gmra.mxu0 %v364
    %v366 = vpop.f32.mrf.mxu0
    %v367 = vadd.f32 %v343, %v366
    %368 = vdwg.mxu0
    %369 = vmatpush.msra.mxu0 0.0
    %370 = vmatpush.msra.mxu0 0.0
    %371 = vmatpush.msra.mxu0 0.0
    %372 = vmatpush.msra.mxu0 0.0
    %373 = vmatpush.msra.mxu0 0.0
    %374 = vmatpush.msra.mxu0 0.0
    %375 = vmatpush.msra.mxu0 0.0
    %376 = vmatpush.msra.mxu0 0.0
    %377 = vmatpush.msra.mxu0 0.0
    %378 = vmatpush.msra.mxu0 0.0
    %379 = vmatpush.msra.mxu0 0.0
    %380 = vmatpush.msra.mxu0 0.0
    %381 = vmatpush.msra.mxu0 0.0
    %382 = vmatpush.msra.mxu0 0.0
    %383 = vmatpush.msra.mxu0 0.0
    %v384 = vand.u32 %v288, 4294901760
    %385 = vmatpush.msra.mxu0 %v384
    %v386 = vand.u32 %v291, 4294901760
    %v387 = vsub.f32 %v291, %v386
    %v388 = vand.u32 %v387, 4294901760
    %389 = vmatmul.f32.gmra.mxu0 %v388
    %v390 = vpop.f32.mrf.mxu0
    %v391 = vadd.f32 %v367, %v390
    %392 = vdwg.mxu0
    %393 = vmatpush.msra.mxu0 0.0
    %394 = vmatpush.msra.mxu0 0.0
    %395 = vmatpush.msra.mxu0 0.0
    %396 = vmatpush.msra.mxu0 0.0
    %397 = vmatpush.msra.mxu0 0.0
    %398 = vmatpush.msra.mxu0 0.0
    %399 = vmatpush.msra.mxu0 0.0
    %400 = vmatpush.msra.mxu0 0.0
    %401 = vmatpush.msra.mxu0 0.0
    %402 = vmatpush.msra.mxu0 0.0
    %403 = vmatpush.msra.mxu0 0.0
    %404 = vmatpush.msra.mxu0 0.0
    %405 = vmatpush.msra.mxu0 0.0
    %406 = vmatpush.msra.mxu0 0.0
    %407 = vmatpush.msra.mxu0 0.0
    %v408 = vand.u32 %v288, 4294901760
    %v409 = vsub.f32 %v288, %v408
    %v410 = vand.u32 %v409, 4294901760
    %411 = vmatpush.msra.mxu0 %v410
    %v412 = vand.u32 %v291, 4294901760
    %413 = vmatmul.f32.gmra.mxu0 %v412
    %v414 = vpop.f32.mrf.mxu0
    %v415 = vadd.f32 %v391, %v414
    %416 = vdwg.mxu0
    %417 = vmatpush.msra.mxu0 0.0
    %418 = vmatpush.msra.mxu0 0.0
    %419 = vmatpush.msra.mxu0 0.0
    %420 = vmatpush.msra.mxu0 0.0
    %421 = vmatpush.msra.mxu0 0.0
    %422 = vmatpush.msra.mxu0 0.0
    %423 = vmatpush.msra.mxu0 0.0
    %424 = vmatpush.msra.mxu0 0.0
    %425 = vmatpush.msra.mxu0 0.0
    %426 = vmatpush.msra.mxu0 0.0
    %427 = vmatpush.msra.mxu0 0.0
    %428 = vmatpush.msra.mxu0 0.0
    %429 = vmatpush.msra.mxu0 0.0
    %430 = vmatpush.msra.mxu0 0.0
    %431 = vmatpush.msra.mxu0 0.0
    %v432 = vand.u32 %v288, 4294901760
    %433 = vmatpush.msra.mxu0 %v432
    %v434 = vand.u32 %v291, 4294901760
    %435 = vmatmul.f32.gmra.mxu0 %v434
    %v436 = vpop.f32.mrf.mxu0
    %v437 = vadd.f32 %v415, %v436
    %438 = vdwg.mxu0
    %v440 = vsel %vm86, %v140, 0
    %442 = vmatpush.msra.mxu0 0.0
    %443 = vmatpush.msra.mxu0 0.0
    %444 = vmatpush.msra.mxu0 0.0
    %445 = vmatpush.msra.mxu0 0.0
    %446 = vmatpush.msra.mxu0 0.0
    %447 = vmatpush.msra.mxu0 0.0
    %448 = vmatpush.msra.mxu0 0.0
    %449 = vmatpush.msra.mxu0 0.0
    %450 = vmatpush.msra.mxu0 0.0
    %451 = vmatpush.msra.mxu0 0.0
    %452 = vmatpush.msra.mxu0 0.0
    %453 = vmatpush.msra.mxu0 0.0
    %454 = vmatpush.msra.mxu0 0.0
    %455 = vmatpush.msra.mxu0 0.0
    %456 = vmatpush.msra.mxu0 0.0
    %v457 = vand.u32 %v78, 4294901760
    %458 = vmatpush.msra.mxu0 %v457
    %v459 = vand.u32 %v440, 4294901760
    %v460 = vsub.f32 %v440, %v459
    %v461 = vand.u32 %v460, 4294901760
    %v462 = vsub.f32 %v460, %v461
    %v463 = vand.u32 %v462, 4294901760
    %464 = vmatmul.f32.gmra.mxu0 %v463
    %v465 = vpop.f32.mrf.mxu0
    %v466 = vadd.f32 0.0, %v465
    %467 = vdwg.mxu0
    %468 = vmatpush.msra.mxu0 0.0
    %469 = vmatpush.msra.mxu0 0.0
    %470 = vmatpush.msra.mxu0 0.0
    %471 = vmatpush.msra.mxu0 0.0
    %472 = vmatpush.msra.mxu0 0.0
    %473 = vmatpush.msra.mxu0 0.0
    %474 = vmatpush.msra.mxu0 0.0
    %475 = vmatpush.msra.mxu0 0.0
    %476 = vmatpush.msra.mxu0 0.0
    %477 = vmatpush.msra.mxu0 0.0
    %478 = vmatpush.msra.mxu0 0.0
    %479 = vmatpush.msra.mxu0 0.0
    %480 = vmatpush.msra.mxu0 0.0
    %481 = vmatpush.msra.mxu0 0.0
    %482 = vmatpush.msra.mxu0 0.0
    %v483 = vand.u32 %v78, 4294901760
    %v484 = vsub.f32 %v78, %v483
    %v485 = vand.u32 %v484, 4294901760
    %v486 = vsub.f32 %v484, %v485
    %v487 = vand.u32 %v486, 4294901760
    %488 = vmatpush.msra.mxu0 %v487
    %v489 = vand.u32 %v440, 4294901760
    %490 = vmatmul.f32.gmra.mxu0 %v489
    %v491 = vpop.f32.mrf.mxu0
    %v492 = vadd.f32 %v466, %v491
    %493 = vdwg.mxu0
    %494 = vmatpush.msra.mxu0 0.0
    %495 = vmatpush.msra.mxu0 0.0
    %496 = vmatpush.msra.mxu0 0.0
    %497 = vmatpush.msra.mxu0 0.0
    %498 = vmatpush.msra.mxu0 0.0
    %499 = vmatpush.msra.mxu0 0.0
    %500 = vmatpush.msra.mxu0 0.0
    %501 = vmatpush.msra.mxu0 0.0
    %502 = vmatpush.msra.mxu0 0.0
    %503 = vmatpush.msra.mxu0 0.0
    %504 = vmatpush.msra.mxu0 0.0
    %505 = vmatpush.msra.mxu0 0.0
    %506 = vmatpush.msra.mxu0 0.0
    %507 = vmatpush.msra.mxu0 0.0
    %508 = vmatpush.msra.mxu0 0.0
    %v509 = vand.u32 %v78, 4294901760
    %v510 = vsub.f32 %v78, %v509
    %511 = vmatpush.msra.mxu0 %v510
    %v512 = vand.u32 %v440, 4294901760
    %v513 = vsub.f32 %v440, %v512
    %514 = vmatmul.f32.gmra.mxu0 %v513
    %v515 = vpop.f32.mrf.mxu0
    %v516 = vadd.f32 %v492, %v515
    %517 = vdwg.mxu0
    %518 = vmatpush.msra.mxu0 0.0
    %519 = vmatpush.msra.mxu0 0.0
    %520 = vmatpush.msra.mxu0 0.0
    %521 = vmatpush.msra.mxu0 0.0
    %522 = vmatpush.msra.mxu0 0.0
    %523 = vmatpush.msra.mxu0 0.0
    %524 = vmatpush.msra.mxu0 0.0
    %525 = vmatpush.msra.mxu0 0.0
    %526 = vmatpush.msra.mxu0 0.0
    %527 = vmatpush.msra.mxu0 0.0
    %528 = vmatpush.msra.mxu0 0.0
    %529 = vmatpush.msra.mxu0 0.0
    %530 = vmatpush.msra.mxu0 0.0
    %531 = vmatpush.msra.mxu0 0.0
    %532 = vmatpush.msra.mxu0 0.0
    %v533 = vand.u32 %v78, 4294901760
    %534 = vmatpush.msra.mxu0 %v533
    %v535 = vand.u32 %v440, 4294901760
    %v536 = vsub.f32 %v440, %v535
    %v537 = vand.u32 %v536, 4294901760
    %538 = vmatmul.f32.gmra.mxu0 %v537
    %v539 = vpop.f32.mrf.mxu0
    %v540 = vadd.f32 %v516, %v539
    %541 = vdwg.mxu0
    %542 = vmatpush.msra.mxu0 0.0
    %543 = vmatpush.msra.mxu0 0.0
    %544 = vmatpush.msra.mxu0 0.0
    %545 = vmatpush.msra.mxu0 0.0
    %546 = vmatpush.msra.mxu0 0.0
    %547 = vmatpush.msra.mxu0 0.0
    %548 = vmatpush.msra.mxu0 0.0
    %549 = vmatpush.msra.mxu0 0.0
    %550 = vmatpush.msra.mxu0 0.0
    %551 = vmatpush.msra.mxu0 0.0
    %552 = vmatpush.msra.mxu0 0.0
    %553 = vmatpush.msra.mxu0 0.0
    %554 = vmatpush.msra.mxu0 0.0
    %555 = vmatpush.msra.mxu0 0.0
    %556 = vmatpush.msra.mxu0 0.0
    %v557 = vand.u32 %v78, 4294901760
    %v558 = vsub.f32 %v78, %v557
    %v559 = vand.u32 %v558, 4294901760
    %560 = vmatpush.msra.mxu0 %v559
    %v561 = vand.u32 %v440, 4294901760
    %562 = vmatmul.f32.gmra.mxu0 %v561
    %v563 = vpop.f32.mrf.mxu0
    %v564 = vadd.f32 %v540, %v563
    %565 = vdwg.mxu0
    %566 = vmatpush.msra.mxu0 0.0
    %567 = vmatpush.msra.mxu0 0.0
    %568 = vmatpush.msra.mxu0 0.0
    %569 = vmatpush.msra.mxu0 0.0
    %570 = vmatpush.msra.mxu0 0.0
    %571 = vmatpush.msra.mxu0 0.0
    %572 = vmatpush.msra.mxu0 0.0
    %573 = vmatpush.msra.mxu0 0.0
    %574 = vmatpush.msra.mxu0 0.0
    %575 = vmatpush.msra.mxu0 0.0
    %576 = vmatpush.msra.mxu0 0.0
    %577 = vmatpush.msra.mxu0 0.0
    %578 = vmatpush.msra.mxu0 0.0
    %579 = vmatpush.msra.mxu0 0.0
    %580 = vmatpush.msra.mxu0 0.0
    %v581 = vand.u32 %v78, 4294901760
    %582 = vmatpush.msra.mxu0 %v581
    %v583 = vand.u32 %v440, 4294901760
    %584 = vmatmul.f32.gmra.mxu0 %v583
    %v585 = vpop.f32.mrf.mxu0
    %v586 = vadd.f32 %v564, %v585
    %587 = vdwg.mxu0
    %588 = vmatpush.msra.mxu0 0.0
    %589 = vmatpush.msra.mxu0 0.0
    %590 = vmatpush.msra.mxu0 0.0
    %591 = vmatpush.msra.mxu0 0.0
    %592 = vmatpush.msra.mxu0 0.0
    %593 = vmatpush.msra.mxu0 0.0
    %594 = vmatpush.msra.mxu0 0.0
    %595 = vmatpush.msra.mxu0 0.0
    %596 = vmatpush.msra.mxu0 0.0
    %597 = vmatpush.msra.mxu0 0.0
    %598 = vmatpush.msra.mxu0 0.0
    %599 = vmatpush.msra.mxu0 0.0
    %600 = vmatpush.msra.mxu0 0.0
    %601 = vmatpush.msra.mxu0 0.0
    %602 = vmatpush.msra.mxu0 0.0
    %v603 = vand.u32 %v586, 4294901760
    %604 = vmatpush.msra.mxu0 %v603
    %v605 = vand.u32 %v291, 4294901760
    %v606 = vsub.f32 %v291, %v605
    %v607 = vand.u32 %v606, 4294901760
    %v608 = vsub.f32 %v606, %v607
    %v609 = vand.u32 %v608, 4294901760
    %610 = vmatmul.f32.gmra.mxu0 %v609
    %v611 = vpop.f32.mrf.mxu0
    %v612 = vadd.f32 0.0, %v611
    %613 = vdwg.mxu0
    %614 = vmatpush.msra.mxu0 0.0
    %615 = vmatpush.msra.mxu0 0.0
    %616 = vmatpush.msra.mxu0 0.0
    %617 = vmatpush.msra.mxu0 0.0
    %618 = vmatpush.msra.mxu0 0.0
    %619 = vmatpush.msra.mxu0 0.0
    %620 = vmatpush.msra.mxu0 0.0
    %621 = vmatpush.msra.mxu0 0.0
    %622 = vmatpush.msra.mxu0 0.0
    %623 = vmatpush.msra.mxu0 0.0
    %624 = vmatpush.msra.mxu0 0.0
    %625 = vmatpush.msra.mxu0 0.0
    %626 = vmatpush.msra.mxu0 0.0
    %627 = vmatpush.msra.mxu0 0.0
    %628 = vmatpush.msra.mxu0 0.0
    %v629 = vand.u32 %v586, 4294901760
    %v630 = vsub.f32 %v586, %v629
    %v631 = vand.u32 %v630, 4294901760
    %v632 = vsub.f32 %v630, %v631
    %v633 = vand.u32 %v632, 4294901760
    %634 = vmatpush.msra.mxu0 %v633
    %v635 = vand.u32 %v291, 4294901760
    %636 = vmatmul.f32.gmra.mxu0 %v635
    %v637 = vpop.f32.mrf.mxu0
    %v638 = vadd.f32 %v612, %v637
    %639 = vdwg.mxu0
    %640 = vmatpush.msra.mxu0 0.0
    %641 = vmatpush.msra.mxu0 0.0
    %642 = vmatpush.msra.mxu0 0.0
    %643 = vmatpush.msra.mxu0 0.0
    %644 = vmatpush.msra.mxu0 0.0
    %645 = vmatpush.msra.mxu0 0.0
    %646 = vmatpush.msra.mxu0 0.0
    %647 = vmatpush.msra.mxu0 0.0
    %648 = vmatpush.msra.mxu0 0.0
    %649 = vmatpush.msra.mxu0 0.0
    %650 = vmatpush.msra.mxu0 0.0
    %651 = vmatpush.msra.mxu0 0.0
    %652 = vmatpush.msra.mxu0 0.0
    %653 = vmatpush.msra.mxu0 0.0
    %654 = vmatpush.msra.mxu0 0.0
    %v655 = vand.u32 %v586, 4294901760
    %v656 = vsub.f32 %v586, %v655
    %657 = vmatpush.msra.mxu0 %v656
    %v658 = vand.u32 %v291, 4294901760
    %v659 = vsub.f32 %v291, %v658
    %660 = vmatmul.f32.gmra.mxu0 %v659
    %v661 = vpop.f32.mrf.mxu0
    %v662 = vadd.f32 %v638, %v661
    %663 = vdwg.mxu0
    %664 = vmatpush.msra.mxu0 0.0
    %665 = vmatpush.msra.mxu0 0.0
    %666 = vmatpush.msra.mxu0 0.0
    %667 = vmatpush.msra.mxu0 0.0
    %668 = vmatpush.msra.mxu0 0.0
    %669 = vmatpush.msra.mxu0 0.0
    %670 = vmatpush.msra.mxu0 0.0
    %671 = vmatpush.msra.mxu0 0.0
    %672 = vmatpush.msra.mxu0 0.0
    %673 = vmatpush.msra.mxu0 0.0
    %674 = vmatpush.msra.mxu0 0.0
    %675 = vmatpush.msra.mxu0 0.0
    %676 = vmatpush.msra.mxu0 0.0
    %677 = vmatpush.msra.mxu0 0.0
    %678 = vmatpush.msra.mxu0 0.0
    %v679 = vand.u32 %v586, 4294901760
    %680 = vmatpush.msra.mxu0 %v679
    %v681 = vand.u32 %v291, 4294901760
    %v682 = vsub.f32 %v291, %v681
    %v683 = vand.u32 %v682, 4294901760
    %684 = vmatmul.f32.gmra.mxu0 %v683
    %v685 = vpop.f32.mrf.mxu0
    %v686 = vadd.f32 %v662, %v685
    %687 = vdwg.mxu0
    %688 = vmatpush.msra.mxu0 0.0
    %689 = vmatpush.msra.mxu0 0.0
    %690 = vmatpush.msra.mxu0 0.0
    %691 = vmatpush.msra.mxu0 0.0
    %692 = vmatpush.msra.mxu0 0.0
    %693 = vmatpush.msra.mxu0 0.0
    %694 = vmatpush.msra.mxu0 0.0
    %695 = vmatpush.msra.mxu0 0.0
    %696 = vmatpush.msra.mxu0 0.0
    %697 = vmatpush.msra.mxu0 0.0
    %698 = vmatpush.msra.mxu0 0.0
    %699 = vmatpush.msra.mxu0 0.0
    %700 = vmatpush.msra.mxu0 0.0
    %701 = vmatpush.msra.mxu0 0.0
    %702 = vmatpush.msra.mxu0 0.0
    %v703 = vand.u32 %v586, 4294901760
    %v704 = vsub.f32 %v586, %v703
    %v705 = vand.u32 %v704, 4294901760
    %706 = vmatpush.msra.mxu0 %v705
    %v707 = vand.u32 %v291, 4294901760
    %708 = vmatmul.f32.gmra.mxu0 %v707
    %v709 = vpop.f32.mrf.mxu0
    %v710 = vadd.f32 %v686, %v709
    %711 = vdwg.mxu0
    %712 = vmatpush.msra.mxu0 0.0
    %713 = vmatpush.msra.mxu0 0.0
    %714 = vmatpush.msra.mxu0 0.0
    %715 = vmatpush.msra.mxu0 0.0
    %716 = vmatpush.msra.mxu0 0.0
    %717 = vmatpush.msra.mxu0 0.0
    %718 = vmatpush.msra.mxu0 0.0
    %719 = vmatpush.msra.mxu0 0.0
    %720 = vmatpush.msra.mxu0 0.0
    %721 = vmatpush.msra.mxu0 0.0
    %722 = vmatpush.msra.mxu0 0.0
    %723 = vmatpush.msra.mxu0 0.0
    %724 = vmatpush.msra.mxu0 0.0
    %725 = vmatpush.msra.mxu0 0.0
    %726 = vmatpush.msra.mxu0 0.0
    %v727 = vand.u32 %v586, 4294901760
    %728 = vmatpush.msra.mxu0 %v727
    %v729 = vand.u32 %v291, 4294901760
    %730 = vmatmul.f32.gmra.mxu0 %v729
    %v731 = vpop.f32.mrf.mxu0
    %v732 = vadd.f32 %v710, %v731
    %733 = vdwg.mxu0
    %734 = vst.msk [vmem:[#allocation2] sm:$0xff] %vm86, %v437
    %v735 = vld [vmem:[#allocation3] sm:$0xff]
    %s736 = sadd.s32 0, 8
    %s737 = scalar_lea.vmem [#allocation3], %s736
    %v738 = vld [vmem:[%s737] sm:$0xff]
    %v739 = vld [vmem:[#allocation2] sm:$0xff]
    %v740 = vperm.slane %v735, 0
    %v741 = vlaneseq
    %v742 = vshrl.u32 %v741, 7
    %744 = vset.pattern.permute.xlu0 %v742
    %745 = vperm.xlu0 %744, %v740
    %v746 = vpop.permute.xlu0 %745
    %v747 = vperm.slane %v735, 1
    %v748 = vlaneseq
    %v749 = vshrl.u32 %v748, 7
    %751 = vset.pattern.permute.xlu0 %v749
    %752 = vperm.xlu0 %751, %v747
    %v753 = vpop.permute.xlu0 %752
    %v754 = vperm.slane %v735, 2
    %v755 = vlaneseq
    %v756 = vshrl.u32 %v755, 7
    %758 = vset.pattern.permute.xlu0 %v756
    %759 = vperm.xlu0 %758, %v754
    %v760 = vpop.permute.xlu0 %759
    %v761 = vperm.slane %v735, 3
    %v762 = vlaneseq
    %v763 = vshrl.u32 %v762, 7
    %765 = vset.pattern.permute.xlu0 %v763
    %766 = vperm.xlu0 %765, %v761
    %v767 = vpop.permute.xlu0 %766
    %v768 = vperm.slane %v735, 4
    %v769 = vlaneseq
    %v770 = vshrl.u32 %v769, 7
    %772 = vset.pattern.permute.xlu0 %v770
    %773 = vperm.xlu0 %772, %v768
    %v774 = vpop.permute.xlu0 %773
    %v775 = vperm.slane %v735, 5
    %v776 = vlaneseq
    %v777 = vshrl.u32 %v776, 7
    %779 = vset.pattern.permute.xlu0 %v777
    %780 = vperm.xlu0 %779, %v775
    %v781 = vpop.permute.xlu0 %780
    %v782 = vperm.slane %v735, 6
    %v783 = vlaneseq
    %v784 = vshrl.u32 %v783, 7
    %786 = vset.pattern.permute.xlu0 %v784
    %787 = vperm.xlu0 %786, %v782
    %v788 = vpop.permute.xlu0 %787
    %v789 = vperm.slane %v735, 7
    %v790 = vlaneseq
    %v791 = vshrl.u32 %v790, 7
    %793 = vset.pattern.permute.xlu0 %v791
    %794 = vperm.xlu0 %793, %v789
    %v795 = vpop.permute.xlu0 %794
    %v796 = vsub.f32 %v746, %v83
    %v797 = vsub.f32 %v753, %v83
    %v798 = vsub.f32 %v760, %v83
    %v799 = vsub.f32 %v767, %v83
    %v800 = vsub.f32 %v774, %v83
    %v801 = vsub.f32 %v781, %v83
    %v802 = vsub.f32 %v788, %v83
    %v803 = vsub.f32 %v795, %v83
    %v804 = vperm.slane %v738, 0
    %v805 = vlaneseq
    %v806 = vshrl.u32 %v805, 7
    %808 = vset.pattern.permute.xlu0 %v806
    %809 = vperm.xlu0 %808, %v804
    %v810 = vpop.permute.xlu0 %809
    %v811 = vperm.slane %v738, 1
    %v812 = vlaneseq
    %v813 = vshrl.u32 %v812, 7
    %815 = vset.pattern.permute.xlu0 %v813
    %816 = vperm.xlu0 %815, %v811
    %v817 = vpop.permute.xlu0 %816
    %v818 = vperm.slane %v738, 2
    %v819 = vlaneseq
    %v820 = vshrl.u32 %v819, 7
    %822 = vset.pattern.permute.xlu0 %v820
    %823 = vperm.xlu0 %822, %v818
    %v824 = vpop.permute.xlu0 %823
    %v825 = vperm.slane %v738, 3
    %v826 = vlaneseq
    %v827 = vshrl.u32 %v826, 7
    %829 = vset.pattern.permute.xlu0 %v827
    %830 = vperm.xlu0 %829, %v825
    %v831 = vpop.permute.xlu0 %830
    %v832 = vperm.slane %v738, 4
    %v833 = vlaneseq
    %v834 = vshrl.u32 %v833, 7
    %836 = vset.pattern.permute.xlu0 %v834
    %837 = vperm.xlu0 %836, %v832
    %v838 = vpop.permute.xlu0 %837
    %v839 = vperm.slane %v738, 5
    %v840 = vlaneseq
    %v841 = vshrl.u32 %v840, 7
    %843 = vset.pattern.permute.xlu0 %v841
    %844 = vperm.xlu0 %843, %v839
    %v845 = vpop.permute.xlu0 %844
    %v846 = vperm.slane %v738, 6
    %v847 = vlaneseq
    %v848 = vshrl.u32 %v847, 7
    %850 = vset.pattern.permute.xlu0 %v848
    %851 = vperm.xlu0 %850, %v846
    %v852 = vpop.permute.xlu0 %851
    %v853 = vperm.slane %v738, 7
    %v854 = vlaneseq
    %v855 = vshrl.u32 %v854, 7
    %857 = vset.pattern.permute.xlu0 %v855
    %858 = vperm.xlu0 %857, %v853
    %v859 = vpop.permute.xlu0 %858
    %v860 = vsub.f32 %v810, %v85
    %v861 = vsub.f32 %v817, %v85
    %v862 = vsub.f32 %v824, %v85
    %v863 = vsub.f32 %v831, %v85
    %v864 = vsub.f32 %v838, %v85
    %v865 = vsub.f32 %v845, %v85
    %v866 = vsub.f32 %v852, %v85
    %v867 = vsub.f32 %v859, %v85
    %v868 = vmul.f32 %v796, %v796
    %v869 = vmul.f32 %v797, %v797
    %v870 = vmul.f32 %v798, %v798
    %v871 = vmul.f32 %v799, %v799
    %v872 = vmul.f32 %v800, %v800
    %v873 = vmul.f32 %v801, %v801
    %v874 = vmul.f32 %v802, %v802
    %v875 = vmul.f32 %v803, %v803
    %v876 = vmul.f32 %v860, %v860
    %v877 = vmul.f32 %v861, %v861
    %v878 = vmul.f32 %v862, %v862
    %v879 = vmul.f32 %v863, %v863
    %v880 = vmul.f32 %v864, %v864
    %v881 = vmul.f32 %v865, %v865
    %v882 = vmul.f32 %v866, %v866
    %v883 = vmul.f32 %v867, %v867
    %v884 = vadd.f32 %v868, %v876
    %v885 = vadd.f32 %v869, %v877
    %v886 = vadd.f32 %v870, %v878
    %v887 = vadd.f32 %v871, %v879
    %v888 = vadd.f32 %v872, %v880
    %v889 = vadd.f32 %v873, %v881
    %v890 = vadd.f32 %v874, %v882
    %v891 = vadd.f32 %v875, %v883
    %v892 = vrsqrt.pop %v884
    %v893 = vmul.f32 %v892, %v884
    %v894 = vmul.f32 %v893, %v892
    %v895 = vmul.f32 0.5, %v894
    %v896 = vsub.f32 1.5, %v895
    %v897 = vmul.f32 %v892, %v896
    %v898 = vmul.f32 %v884, %v897
    %vm899 = vcmp.eq.f32.partialorder %v884, inf
    %v900 = vsel %vm899, %v884, %v898
    %vm901 = vcmp.eq.f32.partialorder %v884, 0.0
    %v902 = vand.u32 %v884, 2147483648
    %v903 = vsel %vm901, %v902, %v900
    %v904 = vrsqrt.pop %v885
    %v905 = vmul.f32 %v904, %v885
    %v906 = vmul.f32 %v905, %v904
    %v907 = vmul.f32 0.5, %v906
    %v908 = vsub.f32 1.5, %v907
    %v909 = vmul.f32 %v904, %v908
    %v910 = vmul.f32 %v885, %v909
    %vm911 = vcmp.eq.f32.partialorder %v885, inf
    %v912 = vsel %vm911, %v885, %v910
    %vm913 = vcmp.eq.f32.partialorder %v885, 0.0
    %v914 = vand.u32 %v885, 2147483648
    %v915 = vsel %vm913, %v914, %v912
    %v916 = vrsqrt.pop %v886
    %v917 = vmul.f32 %v916, %v886
    %v918 = vmul.f32 %v917, %v916
    %v919 = vmul.f32 0.5, %v918
    %v920 = vsub.f32 1.5, %v919
    %v921 = vmul.f32 %v916, %v920
    %v922 = vmul.f32 %v886, %v921
    %vm923 = vcmp.eq.f32.partialorder %v886, inf
    %v924 = vsel %vm923, %v886, %v922
    %vm925 = vcmp.eq.f32.partialorder %v886, 0.0
    %v926 = vand.u32 %v886, 2147483648
    %v927 = vsel %vm925, %v926, %v924
    %v928 = vrsqrt.pop %v887
    %v929 = vmul.f32 %v928, %v887
    %v930 = vmul.f32 %v929, %v928
    %v931 = vmul.f32 0.5, %v930
    %v932 = vsub.f32 1.5, %v931
    %v933 = vmul.f32 %v928, %v932
    %v934 = vmul.f32 %v887, %v933
    %vm935 = vcmp.eq.f32.partialorder %v887, inf
    %v936 = vsel %vm935, %v887, %v934
    %vm937 = vcmp.eq.f32.partialorder %v887, 0.0
    %v938 = vand.u32 %v887, 2147483648
    %v939 = vsel %vm937, %v938, %v936
    %v940 = vrsqrt.pop %v888
    %v941 = vmul.f32 %v940, %v888
    %v942 = vmul.f32 %v941, %v940
    %v943 = vmul.f32 0.5, %v942
    %v944 = vsub.f32 1.5, %v943
    %v945 = vmul.f32 %v940, %v944
    %v946 = vmul.f32 %v888, %v945
    %vm947 = vcmp.eq.f32.partialorder %v888, inf
    %v948 = vsel %vm947, %v888, %v946
    %vm949 = vcmp.eq.f32.partialorder %v888, 0.0
    %v950 = vand.u32 %v888, 2147483648
    %v951 = vsel %vm949, %v950, %v948
    %v952 = vrsqrt.pop %v889
    %v953 = vmul.f32 %v952, %v889
    %v954 = vmul.f32 %v953, %v952
    %v955 = vmul.f32 0.5, %v954
    %v956 = vsub.f32 1.5, %v955
    %v957 = vmul.f32 %v952, %v956
    %v958 = vmul.f32 %v889, %v957
    %vm959 = vcmp.eq.f32.partialorder %v889, inf
    %v960 = vsel %vm959, %v889, %v958
    %vm961 = vcmp.eq.f32.partialorder %v889, 0.0
    %v962 = vand.u32 %v889, 2147483648
    %v963 = vsel %vm961, %v962, %v960
    %v964 = vrsqrt.pop %v890
    %v965 = vmul.f32 %v964, %v890
    %v966 = vmul.f32 %v965, %v964
    %v967 = vmul.f32 0.5, %v966
    %v968 = vsub.f32 1.5, %v967
    %v969 = vmul.f32 %v964, %v968
    %v970 = vmul.f32 %v890, %v969
    %vm971 = vcmp.eq.f32.partialorder %v890, inf
    %v972 = vsel %vm971, %v890, %v970
    %vm973 = vcmp.eq.f32.partialorder %v890, 0.0
    %v974 = vand.u32 %v890, 2147483648
    %v975 = vsel %vm973, %v974, %v972
    %v976 = vrsqrt.pop %v891
    %v977 = vmul.f32 %v976, %v891
    %v978 = vmul.f32 %v977, %v976
    %v979 = vmul.f32 0.5, %v978
    %v980 = vsub.f32 1.5, %v979
    %v981 = vmul.f32 %v976, %v980
    %v982 = vmul.f32 %v891, %v981
    %vm983 = vcmp.eq.f32.partialorder %v891, inf
    %v984 = vsel %vm983, %v891, %v982
    %vm985 = vcmp.eq.f32.partialorder %v891, 0.0
    %v986 = vand.u32 %v891, 2147483648
    %v987 = vsel %vm985, %v986, %v984
    %v988 = vperm.slane %v739, 0
    %v989 = vlaneseq
    %v990 = vshrl.u32 %v989, 7
    %992 = vset.pattern.permute.xlu0 %v990
    %993 = vperm.xlu0 %992, %v988
    %v994 = vpop.permute.xlu0 %993
    %v995 = vperm.slane %v739, 1
    %v996 = vlaneseq
    %v997 = vshrl.u32 %v996, 7
    %999 = vset.pattern.permute.xlu0 %v997
    %1000 = vperm.xlu0 %999, %v995
    %v1001 = vpop.permute.xlu0 %1000
    %v1002 = vperm.slane %v739, 2
    %v1003 = vlaneseq
    %v1004 = vshrl.u32 %v1003, 7
    %1006 = vset.pattern.permute.xlu0 %v1004
    %1007 = vperm.xlu0 %1006, %v1002
    %v1008 = vpop.permute.xlu0 %1007
    %v1009 = vperm.slane %v739, 3
    %v1010 = vlaneseq
    %v1011 = vshrl.u32 %v1010, 7
    %1013 = vset.pattern.permute.xlu0 %v1011
    %1014 = vperm.xlu0 %1013, %v1009
    %v1015 = vpop.permute.xlu0 %1014
    %v1016 = vperm.slane %v739, 4
    %v1017 = vlaneseq
    %v1018 = vshrl.u32 %v1017, 7
    %1020 = vset.pattern.permute.xlu0 %v1018
    %1021 = vperm.xlu0 %1020, %v1016
    %v1022 = vpop.permute.xlu0 %1021
    %v1023 = vperm.slane %v739, 5
    %v1024 = vlaneseq
    %v1025 = vshrl.u32 %v1024, 7
    %1027 = vset.pattern.permute.xlu0 %v1025
    %1028 = vperm.xlu0 %1027, %v1023
    %v1029 = vpop.permute.xlu0 %1028
    %v1030 = vperm.slane %v739, 6
    %v1031 = vlaneseq
    %v1032 = vshrl.u32 %v1031, 7
    %1034 = vset.pattern.permute.xlu0 %v1032
    %1035 = vperm.xlu0 %1034, %v1030
    %v1036 = vpop.permute.xlu0 %1035
    %v1037 = vperm.slane %v739, 7
    %v1038 = vlaneseq
    %v1039 = vshrl.u32 %v1038, 7
    %1041 = vset.pattern.permute.xlu0 %v1039
    %1042 = vperm.xlu0 %1041, %v1037
    %v1043 = vpop.permute.xlu0 %1042
    %v1044 = vsub.f32 %v994, %v732
    %v1045 = vsub.f32 %v1001, %v732
    %v1046 = vsub.f32 %v1008, %v732
    %v1047 = vsub.f32 %v1015, %v732
    %v1048 = vsub.f32 %v1022, %v732
    %v1049 = vsub.f32 %v1029, %v732
    %v1050 = vsub.f32 %v1036, %v732
    %v1051 = vsub.f32 %v1043, %v732
    %v1052 = vmul.f32 %v903, %v1044
    %v1053 = vmul.f32 %v915, %v1045
    %v1054 = vmul.f32 %v927, %v1046
    %v1055 = vmul.f32 %v939, %v1047
    %v1056 = vmul.f32 %v951, %v1048
    %v1057 = vmul.f32 %v963, %v1049
    %v1058 = vmul.f32 %v975, %v1050
    %v1059 = vmul.f32 %v987, %v1051
    %v1060 = vmul.f32 %v1052, %v1044
    %v1061 = vmul.f32 %v1053, %v1045
    %v1062 = vmul.f32 %v1054, %v1046
    %v1063 = vmul.f32 %v1055, %v1047
    %v1064 = vmul.f32 %v1056, %v1048
    %v1065 = vmul.f32 %v1057, %v1049
    %v1066 = vmul.f32 %v1058, %v1050
    %v1067 = vmul.f32 %v1059, %v1051
    %v1068 = vsel %vm86, %v1060, 0.0
    %v1069 = vsel %vm86, %v1061, 0.0
    %v1070 = vadd.f32 %v1068, %v1069
    %v1071 = vsel %vm86, %v1062, 0.0
    %v1072 = vadd.f32 %v1070, %v1071
    %v1073 = vsel %vm86, %v1063, 0.0
    %v1074 = vadd.f32 %v1072, %v1073
    %v1075 = vsel %vm86, %v1064, 0.0
    %v1076 = vadd.f32 %v1074, %v1075
    %v1077 = vsel %vm86, %v1065, 0.0
    %v1078 = vadd.f32 %v1076, %v1077
    %v1079 = vsel %vm86, %v1066, 0.0
    %v1080 = vadd.f32 %v1078, %v1079
    %v1081 = vsel %vm86, %v1067, 0.0
    %v1082 = vadd.f32 %v1080, %v1081
    %v1083 = vadd.f32 %v1082, 0.0
    %v1084 = vsel %vm86, %v1083, 0.0
    %v1085 = vrot.slane %v1084, 4
    %v1086 = vadd.f32 %v1084, %v1085
    %v1087 = vrot.slane %v1086, 2
    %v1088 = vadd.f32 %v1086, %v1087
    %v1089 = vrot.slane %v1088, 1
    %v1090 = vadd.f32 %v1088, %v1089
    %vm1091 = vcmask 57344
    %1092 = vst.msk [vmem:[#allocation11] sm:$0x1] %vm1091, %v1090
    %s1093 = scalar_lea.vmem [#allocation3], 40
    %v1094 = vld [vmem:[%s1093] sm:$0xff]
    %s1095 = scalar_lea.vmem [#allocation6], 40
    %v1096 = vld [vmem:[%s1095] sm:$0xff]
    %s1097 = scalar_lea.vmem [#allocation6], 24
    %v1098 = vld [vmem:[%s1097] sm:$0xff]
    %s1099 = scalar_lea.vmem [#allocation6], 32
    %v1100 = vld [vmem:[%s1099] sm:$0xff]
    %v1101 = vsel %vm86, %v1094, 0.0
    %1102 = vadd.xlane.f32.xlu0 %v1101
    %v1103 = vpop.xlane.xlu0 %1102
    %v1104 = vrot.slane %v1103, 4
    %v1105 = vadd.f32 %v1103, %v1104
    %v1106 = vrot.slane %v1105, 2
    %v1107 = vadd.f32 %v1105, %v1106
    %v1108 = vrot.slane %v1107, 1
    %v1109 = vadd.f32 %v1107, %v1108
    %s1110 = vtos %v1109
    %s1111 = sadd.f32 %s1110, 1e-06
    %v1112 = vstv %s1111
    %v1113 = vrcp.pop %v1112
    %v1114 = vmul.f32 %v1112, %v1113
    %v1115 = vsub.f32 1.0, %v1114
    %v1116 = vmul.f32 %v1113, %v1115
    %v1117 = vadd.f32 %v1113, %v1116
    %vm1118 = vweird.f32 %v1112
    %vm1119 = vweird.f32 %v1113
    %vm1120 = vmor %vm1118, %vm1119
    %v1121 = vsel %vm1120, %v1113, %v1117
    %v1122 = vand.u32 2147483647, %v1112
    %vm1123 = vcmp.eq.f32.partialorder %v1122, 8.507059e+37
    %v1124 = vand.u32 %v1112, 2147483648
    %v1125 = vor.u32 1.1754944e-38, %v1124
    %v1126 = vsel %vm1123, %v1125, %v1121
    %v1127 = vmul.f32 %v1094, %v1126
    %v1128 = vsel %vm86, %v1096, 0.0
    %1129 = vadd.xlane.f32.xlu0 %v1128
    %v1130 = vpop.xlane.xlu0 %1129
    %v1131 = vrot.slane %v1130, 4
    %v1132 = vadd.f32 %v1130, %v1131
    %v1133 = vrot.slane %v1132, 2
    %v1134 = vadd.f32 %v1132, %v1133
    %v1135 = vrot.slane %v1134, 1
    %v1136 = vadd.f32 %v1134, %v1135
    %s1137 = vtos %v1136
    %s1138 = sadd.f32 %s1137, 1e-06
    %v1139 = vstv %s1138
    %v1140 = vrcp.pop %v1139
    %v1141 = vmul.f32 %v1139, %v1140
    %v1142 = vsub.f32 1.0, %v1141
    %v1143 = vmul.f32 %v1140, %v1142
    %v1144 = vadd.f32 %v1140, %v1143
    %vm1145 = vweird.f32 %v1139
    %vm1146 = vweird.f32 %v1140
    %vm1147 = vmor %vm1145, %vm1146
    %v1148 = vsel %vm1147, %v1140, %v1144
    %v1149 = vand.u32 2147483647, %v1139
    %vm1150 = vcmp.eq.f32.partialorder %v1149, 8.507059e+37
    %v1151 = vand.u32 %v1139, 2147483648
    %v1152 = vor.u32 1.1754944e-38, %v1151
    %v1153 = vsel %vm1150, %v1152, %v1148
    %v1154 = vmul.f32 %v1096, %v1153
    %v1156 = vsel %vm86, %v1127, 0
    %1158 = vmatpush.msra.mxu0 0.0
    %1159 = vmatpush.msra.mxu0 0.0
    %1160 = vmatpush.msra.mxu0 0.0
    %1161 = vmatpush.msra.mxu0 0.0
    %1162 = vmatpush.msra.mxu0 0.0
    %1163 = vmatpush.msra.mxu0 0.0
    %1164 = vmatpush.msra.mxu0 0.0
    %1165 = vmatpush.msra.mxu0 0.0
    %1166 = vmatpush.msra.mxu0 0.0
    %1167 = vmatpush.msra.mxu0 0.0
    %1168 = vmatpush.msra.mxu0 0.0
    %1169 = vmatpush.msra.mxu0 0.0
    %1170 = vmatpush.msra.mxu0 0.0
    %1171 = vmatpush.msra.mxu0 0.0
    %1172 = vmatpush.msra.mxu0 0.0
    %v1173 = vand.u32 %v78, 4294901760
    %1174 = vmatpush.msra.mxu0 %v1173
    %v1175 = vand.u32 %v1156, 4294901760
    %v1176 = vsub.f32 %v1156, %v1175
    %v1177 = vand.u32 %v1176, 4294901760
    %v1178 = vsub.f32 %v1176, %v1177
    %v1179 = vand.u32 %v1178, 4294901760
    %1180 = vmatmul.f32.gmra.mxu0 %v1179
    %v1181 = vpop.f32.mrf.mxu0
    %v1182 = vadd.f32 0.0, %v1181
    %1183 = vdwg.mxu0
    %1184 = vmatpush.msra.mxu0 0.0
    %1185 = vmatpush.msra.mxu0 0.0
    %1186 = vmatpush.msra.mxu0 0.0
    %1187 = vmatpush.msra.mxu0 0.0
    %1188 = vmatpush.msra.mxu0 0.0
    %1189 = vmatpush.msra.mxu0 0.0
    %1190 = vmatpush.msra.mxu0 0.0
    %1191 = vmatpush.msra.mxu0 0.0
    %1192 = vmatpush.msra.mxu0 0.0
    %1193 = vmatpush.msra.mxu0 0.0
    %1194 = vmatpush.msra.mxu0 0.0
    %1195 = vmatpush.msra.mxu0 0.0
    %1196 = vmatpush.msra.mxu0 0.0
    %1197 = vmatpush.msra.mxu0 0.0
    %1198 = vmatpush.msra.mxu0 0.0
    %v1199 = vand.u32 %v78, 4294901760
    %v1200 = vsub.f32 %v78, %v1199
    %v1201 = vand.u32 %v1200, 4294901760
    %v1202 = vsub.f32 %v1200, %v1201
    %v1203 = vand.u32 %v1202, 4294901760
    %1204 = vmatpush.msra.mxu0 %v1203
    %v1205 = vand.u32 %v1156, 4294901760
    %1206 = vmatmul.f32.gmra.mxu0 %v1205
    %v1207 = vpop.f32.mrf.mxu0
    %v1208 = vadd.f32 %v1182, %v1207
    %1209 = vdwg.mxu0
    %1210 = vmatpush.msra.mxu0 0.0
    %1211 = vmatpush.msra.mxu0 0.0
    %1212 = vmatpush.msra.mxu0 0.0
    %1213 = vmatpush.msra.mxu0 0.0
    %1214 = vmatpush.msra.mxu0 0.0
    %1215 = vmatpush.msra.mxu0 0.0
    %1216 = vmatpush.msra.mxu0 0.0
    %1217 = vmatpush.msra.mxu0 0.0
    %1218 = vmatpush.msra.mxu0 0.0
    %1219 = vmatpush.msra.mxu0 0.0
    %1220 = vmatpush.msra.mxu0 0.0
    %1221 = vmatpush.msra.mxu0 0.0
    %1222 = vmatpush.msra.mxu0 0.0
    %1223 = vmatpush.msra.mxu0 0.0
    %1224 = vmatpush.msra.mxu0 0.0
    %v1225 = vand.u32 %v78, 4294901760
    %v1226 = vsub.f32 %v78, %v1225
    %1227 = vmatpush.msra.mxu0 %v1226
    %v1228 = vand.u32 %v1156, 4294901760
    %v1229 = vsub.f32 %v1156, %v1228
    %1230 = vmatmul.f32.gmra.mxu0 %v1229
    %v1231 = vpop.f32.mrf.mxu0
    %v1232 = vadd.f32 %v1208, %v1231
    %1233 = vdwg.mxu0
    %1234 = vmatpush.msra.mxu0 0.0
    %1235 = vmatpush.msra.mxu0 0.0
    %1236 = vmatpush.msra.mxu0 0.0
    %1237 = vmatpush.msra.mxu0 0.0
    %1238 = vmatpush.msra.mxu0 0.0
    %1239 = vmatpush.msra.mxu0 0.0
    %1240 = vmatpush.msra.mxu0 0.0
    %1241 = vmatpush.msra.mxu0 0.0
    %1242 = vmatpush.msra.mxu0 0.0
    %1243 = vmatpush.msra.mxu0 0.0
    %1244 = vmatpush.msra.mxu0 0.0
    %1245 = vmatpush.msra.mxu0 0.0
    %1246 = vmatpush.msra.mxu0 0.0
    %1247 = vmatpush.msra.mxu0 0.0
    %1248 = vmatpush.msra.mxu0 0.0
    %v1249 = vand.u32 %v78, 4294901760
    %1250 = vmatpush.msra.mxu0 %v1249
    %v1251 = vand.u32 %v1156, 4294901760
    %v1252 = vsub.f32 %v1156, %v1251
    %v1253 = vand.u32 %v1252, 4294901760
    %1254 = vmatmul.f32.gmra.mxu0 %v1253
    %v1255 = vpop.f32.mrf.mxu0
    %v1256 = vadd.f32 %v1232, %v1255
    %1257 = vdwg.mxu0
    %1258 = vmatpush.msra.mxu0 0.0
    %1259 = vmatpush.msra.mxu0 0.0
    %1260 = vmatpush.msra.mxu0 0.0
    %1261 = vmatpush.msra.mxu0 0.0
    %1262 = vmatpush.msra.mxu0 0.0
    %1263 = vmatpush.msra.mxu0 0.0
    %1264 = vmatpush.msra.mxu0 0.0
    %1265 = vmatpush.msra.mxu0 0.0
    %1266 = vmatpush.msra.mxu0 0.0
    %1267 = vmatpush.msra.mxu0 0.0
    %1268 = vmatpush.msra.mxu0 0.0
    %1269 = vmatpush.msra.mxu0 0.0
    %1270 = vmatpush.msra.mxu0 0.0
    %1271 = vmatpush.msra.mxu0 0.0
    %1272 = vmatpush.msra.mxu0 0.0
    %v1273 = vand.u32 %v78, 4294901760
    %v1274 = vsub.f32 %v78, %v1273
    %v1275 = vand.u32 %v1274, 4294901760
    %1276 = vmatpush.msra.mxu0 %v1275
    %v1277 = vand.u32 %v1156, 4294901760
    %1278 = vmatmul.f32.gmra.mxu0 %v1277
    %v1279 = vpop.f32.mrf.mxu0
    %v1280 = vadd.f32 %v1256, %v1279
    %1281 = vdwg.mxu0
    %1282 = vmatpush.msra.mxu0 0.0
    %1283 = vmatpush.msra.mxu0 0.0
    %1284 = vmatpush.msra.mxu0 0.0
    %1285 = vmatpush.msra.mxu0 0.0
    %1286 = vmatpush.msra.mxu0 0.0
    %1287 = vmatpush.msra.mxu0 0.0
    %1288 = vmatpush.msra.mxu0 0.0
    %1289 = vmatpush.msra.mxu0 0.0
    %1290 = vmatpush.msra.mxu0 0.0
    %1291 = vmatpush.msra.mxu0 0.0
    %1292 = vmatpush.msra.mxu0 0.0
    %1293 = vmatpush.msra.mxu0 0.0
    %1294 = vmatpush.msra.mxu0 0.0
    %1295 = vmatpush.msra.mxu0 0.0
    %1296 = vmatpush.msra.mxu0 0.0
    %v1297 = vand.u32 %v78, 4294901760
    %1298 = vmatpush.msra.mxu0 %v1297
    %v1299 = vand.u32 %v1156, 4294901760
    %1300 = vmatmul.f32.gmra.mxu0 %v1299
    %v1301 = vpop.f32.mrf.mxu0
    %v1302 = vadd.f32 %v1280, %v1301
    %1303 = vdwg.mxu0
    %1304 = vmatpush.msra.mxu0 0.0
    %1305 = vmatpush.msra.mxu0 0.0
    %1306 = vmatpush.msra.mxu0 0.0
    %1307 = vmatpush.msra.mxu0 0.0
    %1308 = vmatpush.msra.mxu0 0.0
    %1309 = vmatpush.msra.mxu0 0.0
    %1310 = vmatpush.msra.mxu0 0.0
    %1311 = vmatpush.msra.mxu0 0.0
    %1312 = vmatpush.msra.mxu0 0.0
    %1313 = vmatpush.msra.mxu0 0.0
    %1314 = vmatpush.msra.mxu0 0.0
    %1315 = vmatpush.msra.mxu0 0.0
    %1316 = vmatpush.msra.mxu0 0.0
    %1317 = vmatpush.msra.mxu0 0.0
    %1318 = vmatpush.msra.mxu0 0.0
    %v1319 = vand.u32 %v1302, 4294901760
    %1320 = vmatpush.msra.mxu0 %v1319
    %v1321 = vand.u32 %v291, 4294901760
    %v1322 = vsub.f32 %v291, %v1321
    %v1323 = vand.u32 %v1322, 4294901760
    %v1324 = vsub.f32 %v1322, %v1323
    %v1325 = vand.u32 %v1324, 4294901760
    %1326 = vmatmul.f32.gmra.mxu0 %v1325
    %v1327 = vpop.f32.mrf.mxu0
    %v1328 = vadd.f32 0.0, %v1327
    %1329 = vdwg.mxu0
    %1330 = vmatpush.msra.mxu0 0.0
    %1331 = vmatpush.msra.mxu0 0.0
    %1332 = vmatpush.msra.mxu0 0.0
    %1333 = vmatpush.msra.mxu0 0.0
    %1334 = vmatpush.msra.mxu0 0.0
    %1335 = vmatpush.msra.mxu0 0.0
    %1336 = vmatpush.msra.mxu0 0.0
    %1337 = vmatpush.msra.mxu0 0.0
    %1338 = vmatpush.msra.mxu0 0.0
    %1339 = vmatpush.msra.mxu0 0.0
    %1340 = vmatpush.msra.mxu0 0.0
    %1341 = vmatpush.msra.mxu0 0.0
    %1342 = vmatpush.msra.mxu0 0.0
    %1343 = vmatpush.msra.mxu0 0.0
    %1344 = vmatpush.msra.mxu0 0.0
    %v1345 = vand.u32 %v1302, 4294901760
    %v1346 = vsub.f32 %v1302, %v1345
    %v1347 = vand.u32 %v1346, 4294901760
    %v1348 = vsub.f32 %v1346, %v1347
    %v1349 = vand.u32 %v1348, 4294901760
    %1350 = vmatpush.msra.mxu0 %v1349
    %v1351 = vand.u32 %v291, 4294901760
    %1352 = vmatmul.f32.gmra.mxu0 %v1351
    %v1353 = vpop.f32.mrf.mxu0
    %v1354 = vadd.f32 %v1328, %v1353
    %1355 = vdwg.mxu0
    %1356 = vmatpush.msra.mxu0 0.0
    %1357 = vmatpush.msra.mxu0 0.0
    %1358 = vmatpush.msra.mxu0 0.0
    %1359 = vmatpush.msra.mxu0 0.0
    %1360 = vmatpush.msra.mxu0 0.0
    %1361 = vmatpush.msra.mxu0 0.0
    %1362 = vmatpush.msra.mxu0 0.0
    %1363 = vmatpush.msra.mxu0 0.0
    %1364 = vmatpush.msra.mxu0 0.0
    %1365 = vmatpush.msra.mxu0 0.0
    %1366 = vmatpush.msra.mxu0 0.0
    %1367 = vmatpush.msra.mxu0 0.0
    %1368 = vmatpush.msra.mxu0 0.0
    %1369 = vmatpush.msra.mxu0 0.0
    %1370 = vmatpush.msra.mxu0 0.0
    %v1371 = vand.u32 %v1302, 4294901760
    %v1372 = vsub.f32 %v1302, %v1371
    %1373 = vmatpush.msra.mxu0 %v1372
    %v1374 = vand.u32 %v291, 4294901760
    %v1375 = vsub.f32 %v291, %v1374
    %1376 = vmatmul.f32.gmra.mxu0 %v1375
    %v1377 = vpop.f32.mrf.mxu0
    %v1378 = vadd.f32 %v1354, %v1377
    %1379 = vdwg.mxu0
    %1380 = vmatpush.msra.mxu0 0.0
    %1381 = vmatpush.msra.mxu0 0.0
    %1382 = vmatpush.msra.mxu0 0.0
    %1383 = vmatpush.msra.mxu0 0.0
    %1384 = vmatpush.msra.mxu0 0.0
    %1385 = vmatpush.msra.mxu0 0.0
    %1386 = vmatpush.msra.mxu0 0.0
    %1387 = vmatpush.msra.mxu0 0.0
    %1388 = vmatpush.msra.mxu0 0.0
    %1389 = vmatpush.msra.mxu0 0.0
    %1390 = vmatpush.msra.mxu0 0.0
    %1391 = vmatpush.msra.mxu0 0.0
    %1392 = vmatpush.msra.mxu0 0.0
    %1393 = vmatpush.msra.mxu0 0.0
    %1394 = vmatpush.msra.mxu0 0.0
    %v1395 = vand.u32 %v1302, 4294901760
    %1396 = vmatpush.msra.mxu0 %v1395
    %v1397 = vand.u32 %v291, 4294901760
    %v1398 = vsub.f32 %v291, %v1397
    %v1399 = vand.u32 %v1398, 4294901760
    %1400 = vmatmul.f32.gmra.mxu0 %v1399
    %v1401 = vpop.f32.mrf.mxu0
    %v1402 = vadd.f32 %v1378, %v1401
    %1403 = vdwg.mxu0
    %1404 = vmatpush.msra.mxu0 0.0
    %1405 = vmatpush.msra.mxu0 0.0
    %1406 = vmatpush.msra.mxu0 0.0
    %1407 = vmatpush.msra.mxu0 0.0
    %1408 = vmatpush.msra.mxu0 0.0
    %1409 = vmatpush.msra.mxu0 0.0
    %1410 = vmatpush.msra.mxu0 0.0
    %1411 = vmatpush.msra.mxu0 0.0
    %1412 = vmatpush.msra.mxu0 0.0
    %1413 = vmatpush.msra.mxu0 0.0
    %1414 = vmatpush.msra.mxu0 0.0
    %1415 = vmatpush.msra.mxu0 0.0
    %1416 = vmatpush.msra.mxu0 0.0
    %1417 = vmatpush.msra.mxu0 0.0
    %1418 = vmatpush.msra.mxu0 0.0
    %v1419 = vand.u32 %v1302, 4294901760
    %v1420 = vsub.f32 %v1302, %v1419
    %v1421 = vand.u32 %v1420, 4294901760
    %1422 = vmatpush.msra.mxu0 %v1421
    %v1423 = vand.u32 %v291, 4294901760
    %1424 = vmatmul.f32.gmra.mxu0 %v1423
    %v1425 = vpop.f32.mrf.mxu0
    %v1426 = vadd.f32 %v1402, %v1425
    %1427 = vdwg.mxu0
    %1428 = vmatpush.msra.mxu0 0.0
    %1429 = vmatpush.msra.mxu0 0.0
    %1430 = vmatpush.msra.mxu0 0.0
    %1431 = vmatpush.msra.mxu0 0.0
    %1432 = vmatpush.msra.mxu0 0.0
    %1433 = vmatpush.msra.mxu0 0.0
    %1434 = vmatpush.msra.mxu0 0.0
    %1435 = vmatpush.msra.mxu0 0.0
    %1436 = vmatpush.msra.mxu0 0.0
    %1437 = vmatpush.msra.mxu0 0.0
    %1438 = vmatpush.msra.mxu0 0.0
    %1439 = vmatpush.msra.mxu0 0.0
    %1440 = vmatpush.msra.mxu0 0.0
    %1441 = vmatpush.msra.mxu0 0.0
    %1442 = vmatpush.msra.mxu0 0.0
    %v1443 = vand.u32 %v1302, 4294901760
    %1444 = vmatpush.msra.mxu0 %v1443
    %v1445 = vand.u32 %v291, 4294901760
    %1446 = vmatmul.f32.gmra.mxu0 %v1445
    %v1447 = vpop.f32.mrf.mxu0
    %v1448 = vadd.f32 %v1426, %v1447
    %1449 = vdwg.mxu0
    %v1451 = vsel %vm86, %v1154, 0
    %1453 = vmatpush.msra.mxu0 0.0
    %1454 = vmatpush.msra.mxu0 0.0
    %1455 = vmatpush.msra.mxu0 0.0
    %1456 = vmatpush.msra.mxu0 0.0
    %1457 = vmatpush.msra.mxu0 0.0
    %1458 = vmatpush.msra.mxu0 0.0
    %1459 = vmatpush.msra.mxu0 0.0
    %1460 = vmatpush.msra.mxu0 0.0
    %1461 = vmatpush.msra.mxu0 0.0
    %1462 = vmatpush.msra.mxu0 0.0
    %1463 = vmatpush.msra.mxu0 0.0
    %1464 = vmatpush.msra.mxu0 0.0
    %1465 = vmatpush.msra.mxu0 0.0
    %1466 = vmatpush.msra.mxu0 0.0
    %1467 = vmatpush.msra.mxu0 0.0
    %v1468 = vand.u32 %v78, 4294901760
    %1469 = vmatpush.msra.mxu0 %v1468
    %v1470 = vand.u32 %v1451, 4294901760
    %v1471 = vsub.f32 %v1451, %v1470
    %v1472 = vand.u32 %v1471, 4294901760
    %v1473 = vsub.f32 %v1471, %v1472
    %v1474 = vand.u32 %v1473, 4294901760
    %1475 = vmatmul.f32.gmra.mxu0 %v1474
    %v1476 = vpop.f32.mrf.mxu0
    %v1477 = vadd.f32 0.0, %v1476
    %1478 = vdwg.mxu0
    %1479 = vmatpush.msra.mxu0 0.0
    %1480 = vmatpush.msra.mxu0 0.0
    %1481 = vmatpush.msra.mxu0 0.0
    %1482 = vmatpush.msra.mxu0 0.0
    %1483 = vmatpush.msra.mxu0 0.0
    %1484 = vmatpush.msra.mxu0 0.0
    %1485 = vmatpush.msra.mxu0 0.0
    %1486 = vmatpush.msra.mxu0 0.0
    %1487 = vmatpush.msra.mxu0 0.0
    %1488 = vmatpush.msra.mxu0 0.0
    %1489 = vmatpush.msra.mxu0 0.0
    %1490 = vmatpush.msra.mxu0 0.0
    %1491 = vmatpush.msra.mxu0 0.0
    %1492 = vmatpush.msra.mxu0 0.0
    %1493 = vmatpush.msra.mxu0 0.0
    %v1494 = vand.u32 %v78, 4294901760
    %v1495 = vsub.f32 %v78, %v1494
    %v1496 = vand.u32 %v1495, 4294901760
    %v1497 = vsub.f32 %v1495, %v1496
    %v1498 = vand.u32 %v1497, 4294901760
    %1499 = vmatpush.msra.mxu0 %v1498
    %v1500 = vand.u32 %v1451, 4294901760
    %1501 = vmatmul.f32.gmra.mxu0 %v1500
    %v1502 = vpop.f32.mrf.mxu0
    %v1503 = vadd.f32 %v1477, %v1502
    %1504 = vdwg.mxu0
    %1505 = vmatpush.msra.mxu0 0.0
    %1506 = vmatpush.msra.mxu0 0.0
    %1507 = vmatpush.msra.mxu0 0.0
    %1508 = vmatpush.msra.mxu0 0.0
    %1509 = vmatpush.msra.mxu0 0.0
    %1510 = vmatpush.msra.mxu0 0.0
    %1511 = vmatpush.msra.mxu0 0.0
    %1512 = vmatpush.msra.mxu0 0.0
    %1513 = vmatpush.msra.mxu0 0.0
    %1514 = vmatpush.msra.mxu0 0.0
    %1515 = vmatpush.msra.mxu0 0.0
    %1516 = vmatpush.msra.mxu0 0.0
    %1517 = vmatpush.msra.mxu0 0.0
    %1518 = vmatpush.msra.mxu0 0.0
    %1519 = vmatpush.msra.mxu0 0.0
    %v1520 = vand.u32 %v78, 4294901760
    %v1521 = vsub.f32 %v78, %v1520
    %1522 = vmatpush.msra.mxu0 %v1521
    %v1523 = vand.u32 %v1451, 4294901760
    %v1524 = vsub.f32 %v1451, %v1523
    %1525 = vmatmul.f32.gmra.mxu0 %v1524
    %v1526 = vpop.f32.mrf.mxu0
    %v1527 = vadd.f32 %v1503, %v1526
    %1528 = vdwg.mxu0
    %1529 = vmatpush.msra.mxu0 0.0
    %1530 = vmatpush.msra.mxu0 0.0
    %1531 = vmatpush.msra.mxu0 0.0
    %1532 = vmatpush.msra.mxu0 0.0
    %1533 = vmatpush.msra.mxu0 0.0
    %1534 = vmatpush.msra.mxu0 0.0
    %1535 = vmatpush.msra.mxu0 0.0
    %1536 = vmatpush.msra.mxu0 0.0
    %1537 = vmatpush.msra.mxu0 0.0
    %1538 = vmatpush.msra.mxu0 0.0
    %1539 = vmatpush.msra.mxu0 0.0
    %1540 = vmatpush.msra.mxu0 0.0
    %1541 = vmatpush.msra.mxu0 0.0
    %1542 = vmatpush.msra.mxu0 0.0
    %1543 = vmatpush.msra.mxu0 0.0
    %v1544 = vand.u32 %v78, 4294901760
    %1545 = vmatpush.msra.mxu0 %v1544
    %v1546 = vand.u32 %v1451, 4294901760
    %v1547 = vsub.f32 %v1451, %v1546
    %v1548 = vand.u32 %v1547, 4294901760
    %1549 = vmatmul.f32.gmra.mxu0 %v1548
    %v1550 = vpop.f32.mrf.mxu0
    %v1551 = vadd.f32 %v1527, %v1550
    %1552 = vdwg.mxu0
    %1553 = vmatpush.msra.mxu0 0.0
    %1554 = vmatpush.msra.mxu0 0.0
    %1555 = vmatpush.msra.mxu0 0.0
    %1556 = vmatpush.msra.mxu0 0.0
    %1557 = vmatpush.msra.mxu0 0.0
    %1558 = vmatpush.msra.mxu0 0.0
    %1559 = vmatpush.msra.mxu0 0.0
    %1560 = vmatpush.msra.mxu0 0.0
    %1561 = vmatpush.msra.mxu0 0.0
    %1562 = vmatpush.msra.mxu0 0.0
    %1563 = vmatpush.msra.mxu0 0.0
    %1564 = vmatpush.msra.mxu0 0.0
    %1565 = vmatpush.msra.mxu0 0.0
    %1566 = vmatpush.msra.mxu0 0.0
    %1567 = vmatpush.msra.mxu0 0.0
    %v1568 = vand.u32 %v78, 4294901760
    %v1569 = vsub.f32 %v78, %v1568
    %v1570 = vand.u32 %v1569, 4294901760
    %1571 = vmatpush.msra.mxu0 %v1570
    %v1572 = vand.u32 %v1451, 4294901760
    %1573 = vmatmul.f32.gmra.mxu0 %v1572
    %v1574 = vpop.f32.mrf.mxu0
    %v1575 = vadd.f32 %v1551, %v1574
    %1576 = vdwg.mxu0
    %1577 = vmatpush.msra.mxu0 0.0
    %1578 = vmatpush.msra.mxu0 0.0
    %1579 = vmatpush.msra.mxu0 0.0
    %1580 = vmatpush.msra.mxu0 0.0
    %1581 = vmatpush.msra.mxu0 0.0
    %1582 = vmatpush.msra.mxu0 0.0
    %1583 = vmatpush.msra.mxu0 0.0
    %1584 = vmatpush.msra.mxu0 0.0
    %1585 = vmatpush.msra.mxu0 0.0
    %1586 = vmatpush.msra.mxu0 0.0
    %1587 = vmatpush.msra.mxu0 0.0
    %1588 = vmatpush.msra.mxu0 0.0
    %1589 = vmatpush.msra.mxu0 0.0
    %1590 = vmatpush.msra.mxu0 0.0
    %1591 = vmatpush.msra.mxu0 0.0
    %v1592 = vand.u32 %v78, 4294901760
    %1593 = vmatpush.msra.mxu0 %v1592
    %v1594 = vand.u32 %v1451, 4294901760
    %1595 = vmatmul.f32.gmra.mxu0 %v1594
    %v1596 = vpop.f32.mrf.mxu0
    %v1597 = vadd.f32 %v1575, %v1596
    %1598 = vdwg.mxu0
    %1599 = vmatpush.msra.mxu0 0.0
    %1600 = vmatpush.msra.mxu0 0.0
    %1601 = vmatpush.msra.mxu0 0.0
    %1602 = vmatpush.msra.mxu0 0.0
    %1603 = vmatpush.msra.mxu0 0.0
    %1604 = vmatpush.msra.mxu0 0.0
    %1605 = vmatpush.msra.mxu0 0.0
    %1606 = vmatpush.msra.mxu0 0.0
    %1607 = vmatpush.msra.mxu0 0.0
    %1608 = vmatpush.msra.mxu0 0.0
    %1609 = vmatpush.msra.mxu0 0.0
    %1610 = vmatpush.msra.mxu0 0.0
    %1611 = vmatpush.msra.mxu0 0.0
    %1612 = vmatpush.msra.mxu0 0.0
    %1613 = vmatpush.msra.mxu0 0.0
    %v1614 = vand.u32 %v1597, 4294901760
    %1615 = vmatpush.msra.mxu0 %v1614
    %v1616 = vand.u32 %v291, 4294901760
    %v1617 = vsub.f32 %v291, %v1616
    %v1618 = vand.u32 %v1617, 4294901760
    %v1619 = vsub.f32 %v1617, %v1618
    %v1620 = vand.u32 %v1619, 4294901760
    %1621 = vmatmul.f32.gmra.mxu0 %v1620
    %v1622 = vpop.f32.mrf.mxu0
    %v1623 = vadd.f32 0.0, %v1622
    %1624 = vdwg.mxu0
    %1625 = vmatpush.msra.mxu0 0.0
    %1626 = vmatpush.msra.mxu0 0.0
    %1627 = vmatpush.msra.mxu0 0.0
    %1628 = vmatpush.msra.mxu0 0.0
    %1629 = vmatpush.msra.mxu0 0.0
    %1630 = vmatpush.msra.mxu0 0.0
    %1631 = vmatpush.msra.mxu0 0.0
    %1632 = vmatpush.msra.mxu0 0.0
    %1633 = vmatpush.msra.mxu0 0.0
    %1634 = vmatpush.msra.mxu0 0.0
    %1635 = vmatpush.msra.mxu0 0.0
    %1636 = vmatpush.msra.mxu0 0.0
    %1637 = vmatpush.msra.mxu0 0.0
    %1638 = vmatpush.msra.mxu0 0.0
    %1639 = vmatpush.msra.mxu0 0.0
    %v1640 = vand.u32 %v1597, 4294901760
    %v1641 = vsub.f32 %v1597, %v1640
    %v1642 = vand.u32 %v1641, 4294901760
    %v1643 = vsub.f32 %v1641, %v1642
    %v1644 = vand.u32 %v1643, 4294901760
    %1645 = vmatpush.msra.mxu0 %v1644
    %v1646 = vand.u32 %v291, 4294901760
    %1647 = vmatmul.f32.gmra.mxu0 %v1646
    %v1648 = vpop.f32.mrf.mxu0
    %v1649 = vadd.f32 %v1623, %v1648
    %1650 = vdwg.mxu0
    %1651 = vmatpush.msra.mxu0 0.0
    %1652 = vmatpush.msra.mxu0 0.0
    %1653 = vmatpush.msra.mxu0 0.0
    %1654 = vmatpush.msra.mxu0 0.0
    %1655 = vmatpush.msra.mxu0 0.0
    %1656 = vmatpush.msra.mxu0 0.0
    %1657 = vmatpush.msra.mxu0 0.0
    %1658 = vmatpush.msra.mxu0 0.0
    %1659 = vmatpush.msra.mxu0 0.0
    %1660 = vmatpush.msra.mxu0 0.0
    %1661 = vmatpush.msra.mxu0 0.0
    %1662 = vmatpush.msra.mxu0 0.0
    %1663 = vmatpush.msra.mxu0 0.0
    %1664 = vmatpush.msra.mxu0 0.0
    %1665 = vmatpush.msra.mxu0 0.0
    %v1666 = vand.u32 %v1597, 4294901760
    %v1667 = vsub.f32 %v1597, %v1666
    %1668 = vmatpush.msra.mxu0 %v1667
    %v1669 = vand.u32 %v291, 4294901760
    %v1670 = vsub.f32 %v291, %v1669
    %1671 = vmatmul.f32.gmra.mxu0 %v1670
    %v1672 = vpop.f32.mrf.mxu0
    %v1673 = vadd.f32 %v1649, %v1672
    %1674 = vdwg.mxu0
    %1675 = vmatpush.msra.mxu0 0.0
    %1676 = vmatpush.msra.mxu0 0.0
    %1677 = vmatpush.msra.mxu0 0.0
    %1678 = vmatpush.msra.mxu0 0.0
    %1679 = vmatpush.msra.mxu0 0.0
    %1680 = vmatpush.msra.mxu0 0.0
    %1681 = vmatpush.msra.mxu0 0.0
    %1682 = vmatpush.msra.mxu0 0.0
    %1683 = vmatpush.msra.mxu0 0.0
    %1684 = vmatpush.msra.mxu0 0.0
    %1685 = vmatpush.msra.mxu0 0.0
    %1686 = vmatpush.msra.mxu0 0.0
    %1687 = vmatpush.msra.mxu0 0.0
    %1688 = vmatpush.msra.mxu0 0.0
    %1689 = vmatpush.msra.mxu0 0.0
    %v1690 = vand.u32 %v1597, 4294901760
    %1691 = vmatpush.msra.mxu0 %v1690
    %v1692 = vand.u32 %v291, 4294901760
    %v1693 = vsub.f32 %v291, %v1692
    %v1694 = vand.u32 %v1693, 4294901760
    %1695 = vmatmul.f32.gmra.mxu0 %v1694
    %v1696 = vpop.f32.mrf.mxu0
    %v1697 = vadd.f32 %v1673, %v1696
    %1698 = vdwg.mxu0
    %1699 = vmatpush.msra.mxu0 0.0
    %1700 = vmatpush.msra.mxu0 0.0
    %1701 = vmatpush.msra.mxu0 0.0
    %1702 = vmatpush.msra.mxu0 0.0
    %1703 = vmatpush.msra.mxu0 0.0
    %1704 = vmatpush.msra.mxu0 0.0
    %1705 = vmatpush.msra.mxu0 0.0
    %1706 = vmatpush.msra.mxu0 0.0
    %1707 = vmatpush.msra.mxu0 0.0
    %1708 = vmatpush.msra.mxu0 0.0
    %1709 = vmatpush.msra.mxu0 0.0
    %1710 = vmatpush.msra.mxu0 0.0
    %1711 = vmatpush.msra.mxu0 0.0
    %1712 = vmatpush.msra.mxu0 0.0
    %1713 = vmatpush.msra.mxu0 0.0
    %v1714 = vand.u32 %v1597, 4294901760
    %v1715 = vsub.f32 %v1597, %v1714
    %v1716 = vand.u32 %v1715, 4294901760
    %1717 = vmatpush.msra.mxu0 %v1716
    %v1718 = vand.u32 %v291, 4294901760
    %1719 = vmatmul.f32.gmra.mxu0 %v1718
    %v1720 = vpop.f32.mrf.mxu0
    %v1721 = vadd.f32 %v1697, %v1720
    %1722 = vdwg.mxu0
    %1723 = vmatpush.msra.mxu0 0.0
    %1724 = vmatpush.msra.mxu0 0.0
    %1725 = vmatpush.msra.mxu0 0.0
    %1726 = vmatpush.msra.mxu0 0.0
    %1727 = vmatpush.msra.mxu0 0.0
    %1728 = vmatpush.msra.mxu0 0.0
    %1729 = vmatpush.msra.mxu0 0.0
    %1730 = vmatpush.msra.mxu0 0.0
    %1731 = vmatpush.msra.mxu0 0.0
    %1732 = vmatpush.msra.mxu0 0.0
    %1733 = vmatpush.msra.mxu0 0.0
    %1734 = vmatpush.msra.mxu0 0.0
    %1735 = vmatpush.msra.mxu0 0.0
    %1736 = vmatpush.msra.mxu0 0.0
    %1737 = vmatpush.msra.mxu0 0.0
    %v1738 = vand.u32 %v1597, 4294901760
    %1739 = vmatpush.msra.mxu0 %v1738
    %v1740 = vand.u32 %v291, 4294901760
    %1741 = vmatmul.f32.gmra.mxu0 %v1740
    %v1742 = vpop.f32.mrf.mxu0
    %v1743 = vadd.f32 %v1721, %v1742
    %1744 = vdwg.mxu0
    %1745 = vst.msk [vmem:[#allocation2] sm:$0xff] %vm86, %v1448
    %s1746 = sadd.s32 0, 24
    %s1747 = scalar_lea.vmem [#allocation3], %s1746
    %v1748 = vld [vmem:[%s1747] sm:$0xff]
    %s1749 = sadd.s32 %s736, 24
    %s1750 = scalar_lea.vmem [#allocation3], %s1749
    %v1751 = vld [vmem:[%s1750] sm:$0xff]
    %v1752 = vld [vmem:[#allocation2] sm:$0xff]
    %v1753 = vperm.slane %v1748, 0
    %v1754 = vlaneseq
    %v1755 = vshrl.u32 %v1754, 7
    %1757 = vset.pattern.permute.xlu0 %v1755
    %1758 = vperm.xlu0 %1757, %v1753
    %v1759 = vpop.permute.xlu0 %1758
    %v1760 = vperm.slane %v1748, 1
    %v1761 = vlaneseq
    %v1762 = vshrl.u32 %v1761, 7
    %1764 = vset.pattern.permute.xlu0 %v1762
    %1765 = vperm.xlu0 %1764, %v1760
    %v1766 = vpop.permute.xlu0 %1765
    %v1767 = vperm.slane %v1748, 2
    %v1768 = vlaneseq
    %v1769 = vshrl.u32 %v1768, 7
    %1771 = vset.pattern.permute.xlu0 %v1769
    %1772 = vperm.xlu0 %1771, %v1767
    %v1773 = vpop.permute.xlu0 %1772
    %v1774 = vperm.slane %v1748, 3
    %v1775 = vlaneseq
    %v1776 = vshrl.u32 %v1775, 7
    %1778 = vset.pattern.permute.xlu0 %v1776
    %1779 = vperm.xlu0 %1778, %v1774
    %v1780 = vpop.permute.xlu0 %1779
    %v1781 = vperm.slane %v1748, 4
    %v1782 = vlaneseq
    %v1783 = vshrl.u32 %v1782, 7
    %1785 = vset.pattern.permute.xlu0 %v1783
    %1786 = vperm.xlu0 %1785, %v1781
    %v1787 = vpop.permute.xlu0 %1786
    %v1788 = vperm.slane %v1748, 5
    %v1789 = vlaneseq
    %v1790 = vshrl.u32 %v1789, 7
    %1792 = vset.pattern.permute.xlu0 %v1790
    %1793 = vperm.xlu0 %1792, %v1788
    %v1794 = vpop.permute.xlu0 %1793
    %v1795 = vperm.slane %v1748, 6
    %v1796 = vlaneseq
    %v1797 = vshrl.u32 %v1796, 7
    %1799 = vset.pattern.permute.xlu0 %v1797
    %1800 = vperm.xlu0 %1799, %v1795
    %v1801 = vpop.permute.xlu0 %1800
    %v1802 = vperm.slane %v1748, 7
    %v1803 = vlaneseq
    %v1804 = vshrl.u32 %v1803, 7
    %1806 = vset.pattern.permute.xlu0 %v1804
    %1807 = vperm.xlu0 %1806, %v1802
    %v1808 = vpop.permute.xlu0 %1807
    %v1809 = vsub.f32 %v1759, %v1098
    %v1810 = vsub.f32 %v1766, %v1098
    %v1811 = vsub.f32 %v1773, %v1098
    %v1812 = vsub.f32 %v1780, %v1098
    %v1813 = vsub.f32 %v1787, %v1098
    %v1814 = vsub.f32 %v1794, %v1098
    %v1815 = vsub.f32 %v1801, %v1098
    %v1816 = vsub.f32 %v1808, %v1098
    %v1817 = vperm.slane %v1751, 0
    %v1818 = vlaneseq
    %v1819 = vshrl.u32 %v1818, 7
    %1821 = vset.pattern.permute.xlu0 %v1819
    %1822 = vperm.xlu0 %1821, %v1817
    %v1823 = vpop.permute.xlu0 %1822
    %v1824 = vperm.slane %v1751, 1
    %v1825 = vlaneseq
    %v1826 = vshrl.u32 %v1825, 7
    %1828 = vset.pattern.permute.xlu0 %v1826
    %1829 = vperm.xlu0 %1828, %v1824
    %v1830 = vpop.permute.xlu0 %1829
    %v1831 = vperm.slane %v1751, 2
    %v1832 = vlaneseq
    %v1833 = vshrl.u32 %v1832, 7
    %1835 = vset.pattern.permute.xlu0 %v1833
    %1836 = vperm.xlu0 %1835, %v1831
    %v1837 = vpop.permute.xlu0 %1836
    %v1838 = vperm.slane %v1751, 3
    %v1839 = vlaneseq
    %v1840 = vshrl.u32 %v1839, 7
    %1842 = vset.pattern.permute.xlu0 %v1840
    %1843 = vperm.xlu0 %1842, %v1838
    %v1844 = vpop.permute.xlu0 %1843
    %v1845 = vperm.slane %v1751, 4
    %v1846 = vlaneseq
    %v1847 = vshrl.u32 %v1846, 7
    %1849 = vset.pattern.permute.xlu0 %v1847
    %1850 = vperm.xlu0 %1849, %v1845
    %v1851 = vpop.permute.xlu0 %1850
    %v1852 = vperm.slane %v1751, 5
    %v1853 = vlaneseq
    %v1854 = vshrl.u32 %v1853, 7
    %1856 = vset.pattern.permute.xlu0 %v1854
    %1857 = vperm.xlu0 %1856, %v1852
    %v1858 = vpop.permute.xlu0 %1857
    %v1859 = vperm.slane %v1751, 6
    %v1860 = vlaneseq
    %v1861 = vshrl.u32 %v1860, 7
    %1863 = vset.pattern.permute.xlu0 %v1861
    %1864 = vperm.xlu0 %1863, %v1859
    %v1865 = vpop.permute.xlu0 %1864
    %v1866 = vperm.slane %v1751, 7
    %v1867 = vlaneseq
    %v1868 = vshrl.u32 %v1867, 7
    %1870 = vset.pattern.permute.xlu0 %v1868
    %1871 = vperm.xlu0 %1870, %v1866
    %v1872 = vpop.permute.xlu0 %1871
    %v1873 = vsub.f32 %v1823, %v1100
    %v1874 = vsub.f32 %v1830, %v1100
    %v1875 = vsub.f32 %v1837, %v1100
    %v1876 = vsub.f32 %v1844, %v1100
    %v1877 = vsub.f32 %v1851, %v1100
    %v1878 = vsub.f32 %v1858, %v1100
    %v1879 = vsub.f32 %v1865, %v1100
    %v1880 = vsub.f32 %v1872, %v1100
    %v1881 = vmul.f32 %v1809, %v1809
    %v1882 = vmul.f32 %v1810, %v1810
    %v1883 = vmul.f32 %v1811, %v1811
    %v1884 = vmul.f32 %v1812, %v1812
    %v1885 = vmul.f32 %v1813, %v1813
    %v1886 = vmul.f32 %v1814, %v1814
    %v1887 = vmul.f32 %v1815, %v1815
    %v1888 = vmul.f32 %v1816, %v1816
    %v1889 = vmul.f32 %v1873, %v1873
    %v1890 = vmul.f32 %v1874, %v1874
    %v1891 = vmul.f32 %v1875, %v1875
    %v1892 = vmul.f32 %v1876, %v1876
    %v1893 = vmul.f32 %v1877, %v1877
    %v1894 = vmul.f32 %v1878, %v1878
    %v1895 = vmul.f32 %v1879, %v1879
    %v1896 = vmul.f32 %v1880, %v1880
    %v1897 = vadd.f32 %v1881, %v1889
    %v1898 = vadd.f32 %v1882, %v1890
    %v1899 = vadd.f32 %v1883, %v1891
    %v1900 = vadd.f32 %v1884, %v1892
    %v1901 = vadd.f32 %v1885, %v1893
    %v1902 = vadd.f32 %v1886, %v1894
    %v1903 = vadd.f32 %v1887, %v1895
    %v1904 = vadd.f32 %v1888, %v1896
    %v1905 = vrsqrt.pop %v1897
    %v1906 = vmul.f32 %v1905, %v1897
    %v1907 = vmul.f32 %v1906, %v1905
    %v1908 = vmul.f32 0.5, %v1907
    %v1909 = vsub.f32 1.5, %v1908
    %v1910 = vmul.f32 %v1905, %v1909
    %v1911 = vmul.f32 %v1897, %v1910
    %vm1912 = vcmp.eq.f32.partialorder %v1897, inf
    %v1913 = vsel %vm1912, %v1897, %v1911
    %vm1914 = vcmp.eq.f32.partialorder %v1897, 0.0
    %v1915 = vand.u32 %v1897, 2147483648
    %v1916 = vsel %vm1914, %v1915, %v1913
    %v1917 = vrsqrt.pop %v1898
    %v1918 = vmul.f32 %v1917, %v1898
    %v1919 = vmul.f32 %v1918, %v1917
    %v1920 = vmul.f32 0.5, %v1919
    %v1921 = vsub.f32 1.5, %v1920
    %v1922 = vmul.f32 %v1917, %v1921
    %v1923 = vmul.f32 %v1898, %v1922
    %vm1924 = vcmp.eq.f32.partialorder %v1898, inf
    %v1925 = vsel %vm1924, %v1898, %v1923
    %vm1926 = vcmp.eq.f32.partialorder %v1898, 0.0
    %v1927 = vand.u32 %v1898, 2147483648
    %v1928 = vsel %vm1926, %v1927, %v1925
    %v1929 = vrsqrt.pop %v1899
    %v1930 = vmul.f32 %v1929, %v1899
    %v1931 = vmul.f32 %v1930, %v1929
    %v1932 = vmul.f32 0.5, %v1931
    %v1933 = vsub.f32 1.5, %v1932
    %v1934 = vmul.f32 %v1929, %v1933
    %v1935 = vmul.f32 %v1899, %v1934
    %vm1936 = vcmp.eq.f32.partialorder %v1899, inf
    %v1937 = vsel %vm1936, %v1899, %v1935
    %vm1938 = vcmp.eq.f32.partialorder %v1899, 0.0
    %v1939 = vand.u32 %v1899, 2147483648
    %v1940 = vsel %vm1938, %v1939, %v1937
    %v1941 = vrsqrt.pop %v1900
    %v1942 = vmul.f32 %v1941, %v1900
    %v1943 = vmul.f32 %v1942, %v1941
    %v1944 = vmul.f32 0.5, %v1943
    %v1945 = vsub.f32 1.5, %v1944
    %v1946 = vmul.f32 %v1941, %v1945
    %v1947 = vmul.f32 %v1900, %v1946
    %vm1948 = vcmp.eq.f32.partialorder %v1900, inf
    %v1949 = vsel %vm1948, %v1900, %v1947
    %vm1950 = vcmp.eq.f32.partialorder %v1900, 0.0
    %v1951 = vand.u32 %v1900, 2147483648
    %v1952 = vsel %vm1950, %v1951, %v1949
    %v1953 = vrsqrt.pop %v1901
    %v1954 = vmul.f32 %v1953, %v1901
    %v1955 = vmul.f32 %v1954, %v1953
    %v1956 = vmul.f32 0.5, %v1955
    %v1957 = vsub.f32 1.5, %v1956
    %v1958 = vmul.f32 %v1953, %v1957
    %v1959 = vmul.f32 %v1901, %v1958
    %vm1960 = vcmp.eq.f32.partialorder %v1901, inf
    %v1961 = vsel %vm1960, %v1901, %v1959
    %vm1962 = vcmp.eq.f32.partialorder %v1901, 0.0
    %v1963 = vand.u32 %v1901, 2147483648
    %v1964 = vsel %vm1962, %v1963, %v1961
    %v1965 = vrsqrt.pop %v1902
    %v1966 = vmul.f32 %v1965, %v1902
    %v1967 = vmul.f32 %v1966, %v1965
    %v1968 = vmul.f32 0.5, %v1967
    %v1969 = vsub.f32 1.5, %v1968
    %v1970 = vmul.f32 %v1965, %v1969
    %v1971 = vmul.f32 %v1902, %v1970
    %vm1972 = vcmp.eq.f32.partialorder %v1902, inf
    %v1973 = vsel %vm1972, %v1902, %v1971
    %vm1974 = vcmp.eq.f32.partialorder %v1902, 0.0
    %v1975 = vand.u32 %v1902, 2147483648
    %v1976 = vsel %vm1974, %v1975, %v1973
    %v1977 = vrsqrt.pop %v1903
    %v1978 = vmul.f32 %v1977, %v1903
    %v1979 = vmul.f32 %v1978, %v1977
    %v1980 = vmul.f32 0.5, %v1979
    %v1981 = vsub.f32 1.5, %v1980
    %v1982 = vmul.f32 %v1977, %v1981
    %v1983 = vmul.f32 %v1903, %v1982
    %vm1984 = vcmp.eq.f32.partialorder %v1903, inf
    %v1985 = vsel %vm1984, %v1903, %v1983
    %vm1986 = vcmp.eq.f32.partialorder %v1903, 0.0
    %v1987 = vand.u32 %v1903, 2147483648
    %v1988 = vsel %vm1986, %v1987, %v1985
    %v1989 = vrsqrt.pop %v1904
    %v1990 = vmul.f32 %v1989, %v1904
    %v1991 = vmul.f32 %v1990, %v1989
    %v1992 = vmul.f32 0.5, %v1991
    %v1993 = vsub.f32 1.5, %v1992
    %v1994 = vmul.f32 %v1989, %v1993
    %v1995 = vmul.f32 %v1904, %v1994
    %vm1996 = vcmp.eq.f32.partialorder %v1904, inf
    %v1997 = vsel %vm1996, %v1904, %v1995
    %vm1998 = vcmp.eq.f32.partialorder %v1904, 0.0
    %v1999 = vand.u32 %v1904, 2147483648
    %v2000 = vsel %vm1998, %v1999, %v1997
    %v2001 = vperm.slane %v1752, 0
    %v2002 = vlaneseq
    %v2003 = vshrl.u32 %v2002, 7
    %2005 = vset.pattern.permute.xlu0 %v2003
    %2006 = vperm.xlu0 %2005, %v2001
    %v2007 = vpop.permute.xlu0 %2006
    %v2008 = vperm.slane %v1752, 1
    %v2009 = vlaneseq
    %v2010 = vshrl.u32 %v2009, 7
    %2012 = vset.pattern.permute.xlu0 %v2010
    %2013 = vperm.xlu0 %2012, %v2008
    %v2014 = vpop.permute.xlu0 %2013
    %v2015 = vperm.slane %v1752, 2
    %v2016 = vlaneseq
    %v2017 = vshrl.u32 %v2016, 7
    %2019 = vset.pattern.permute.xlu0 %v2017
    %2020 = vperm.xlu0 %2019, %v2015
    %v2021 = vpop.permute.xlu0 %2020
    %v2022 = vperm.slane %v1752, 3
    %v2023 = vlaneseq
    %v2024 = vshrl.u32 %v2023, 7
    %2026 = vset.pattern.permute.xlu0 %v2024
    %2027 = vperm.xlu0 %2026, %v2022
    %v2028 = vpop.permute.xlu0 %2027
    %v2029 = vperm.slane %v1752, 4
    %v2030 = vlaneseq
    %v2031 = vshrl.u32 %v2030, 7
    %2033 = vset.pattern.permute.xlu0 %v2031
    %2034 = vperm.xlu0 %2033, %v2029
    %v2035 = vpop.permute.xlu0 %2034
    %v2036 = vperm.slane %v1752, 5
    %v2037 = vlaneseq
    %v2038 = vshrl.u32 %v2037, 7
    %2040 = vset.pattern.permute.xlu0 %v2038
    %2041 = vperm.xlu0 %2040, %v2036
    %v2042 = vpop.permute.xlu0 %2041
    %v2043 = vperm.slane %v1752, 6
    %v2044 = vlaneseq
    %v2045 = vshrl.u32 %v2044, 7
    %2047 = vset.pattern.permute.xlu0 %v2045
    %2048 = vperm.xlu0 %2047, %v2043
    %v2049 = vpop.permute.xlu0 %2048
    %v2050 = vperm.slane %v1752, 7
    %v2051 = vlaneseq
    %v2052 = vshrl.u32 %v2051, 7
    %2054 = vset.pattern.permute.xlu0 %v2052
    %2055 = vperm.xlu0 %2054, %v2050
    %v2056 = vpop.permute.xlu0 %2055
    %v2057 = vsub.f32 %v2007, %v1743
    %v2058 = vsub.f32 %v2014, %v1743
    %v2059 = vsub.f32 %v2021, %v1743
    %v2060 = vsub.f32 %v2028, %v1743
    %v2061 = vsub.f32 %v2035, %v1743
    %v2062 = vsub.f32 %v2042, %v1743
    %v2063 = vsub.f32 %v2049, %v1743
    %v2064 = vsub.f32 %v2056, %v1743
    %v2065 = vmul.f32 %v1916, %v2057
    %v2066 = vmul.f32 %v1928, %v2058
    %v2067 = vmul.f32 %v1940, %v2059
    %v2068 = vmul.f32 %v1952, %v2060
    %v2069 = vmul.f32 %v1964, %v2061
    %v2070 = vmul.f32 %v1976, %v2062
    %v2071 = vmul.f32 %v1988, %v2063
    %v2072 = vmul.f32 %v2000, %v2064
    %v2073 = vmul.f32 %v2065, %v2057
    %v2074 = vmul.f32 %v2066, %v2058
    %v2075 = vmul.f32 %v2067, %v2059
    %v2076 = vmul.f32 %v2068, %v2060
    %v2077 = vmul.f32 %v2069, %v2061
    %v2078 = vmul.f32 %v2070, %v2062
    %v2079 = vmul.f32 %v2071, %v2063
    %v2080 = vmul.f32 %v2072, %v2064
    %v2081 = vsel %vm86, %v2073, 0.0
    %v2082 = vsel %vm86, %v2074, 0.0
    %v2083 = vadd.f32 %v2081, %v2082
    %v2084 = vsel %vm86, %v2075, 0.0
    %v2085 = vadd.f32 %v2083, %v2084
    %v2086 = vsel %vm86, %v2076, 0.0
    %v2087 = vadd.f32 %v2085, %v2086
    %v2088 = vsel %vm86, %v2077, 0.0
    %v2089 = vadd.f32 %v2087, %v2088
    %v2090 = vsel %vm86, %v2078, 0.0
    %v2091 = vadd.f32 %v2089, %v2090
    %v2092 = vsel %vm86, %v2079, 0.0
    %v2093 = vadd.f32 %v2091, %v2092
    %v2094 = vsel %vm86, %v2080, 0.0
    %v2095 = vadd.f32 %v2093, %v2094
    %v2096 = vadd.f32 %v2095, 0.0
    %v2097 = vsel %vm86, %v2096, 0.0
    %v2098 = vrot.slane %v2097, 4
    %v2099 = vadd.f32 %v2097, %v2098
    %v2100 = vrot.slane %v2099, 2
    %v2101 = vadd.f32 %v2099, %v2100
    %v2102 = vrot.slane %v2101, 1
    %v2103 = vadd.f32 %v2101, %v2102
    %s2104 = scalar_lea.vmem [#allocation11], 1
    %2105 = vst.msk [vmem:[%s2104] sm:$0x1] %vm1091, %v2103
    // Predicated region
    $region34: #{tpu_custom_call.1} parent=1 // pred_check
      _
    $region35: #{tpu_custom_call.1} parent=1 // pred_check_branch
      %2107 = sbr.rel (0) target = $region37
    $region36: #{tpu_custom_call.1} parent=1 // pred_region
      %2109 = vsyncadd [#allocation5], 0
      %s2110 = sshll.u32 [#allocation11], 4
      %s2111 = int_to_ptr.vmem [resolvable:$true] %s2110
      %s2112 = sshll.u32 %s4, 4
      %s2113 = int_to_ptr.hbm [resolvable:$true] %s2112
      %2118 = dma.vmem_to_hbm [thread:$0]  %s2111, 32, %s2113, [#allocation5], 16, 16, 1
    $region37: #{tpu_custom_call.1} parent=1 // pred_fallthru
      _
    // Predicated region
    $region38: #{tpu_custom_call.1} parent=1 // pred_check
      _
    $region39: #{tpu_custom_call.1} parent=1 // pred_check_branch
      %2120 = sbr.rel (0) target = $region41
    $region40: #{tpu_custom_call.1} parent=1 // pred_region
      %2122 = dma.done [#allocation5], 32
    $region41: #{tpu_custom_call.1} parent=1 // pred_fallthru
      _
    %2123 = vsyncpa [#allocation4], 1
    %2124 = vsyncpa [#allocation7], 1
    %2125 = vsyncpa [#allocation10], 1
    %2126 = vsyncpa [#allocation5], 1

</llo_original>
